<compile_context>
chip_gen: v7x
topology: tpu7x:2x2x1
jax: 0.10.0
libtpu: 0.0.40
codegen_flags: <defaults>
</compile_context>

<pallas_src>
import functools
import math

import jax
import jax.numpy as jnp
from jax import lax
from jax.experimental import pallas as pl
from jax.experimental.pallas import tpu as pltpu


# ---------------------------------------------------------------------------
# Fused kernel: one (batch, query-tile) grid point.
#   qi == 0 : compute K|V = x @ [Wk^T | Wv^T]  (lane-dense, N = 2C) into VMEM.
#   every qi: Q rows of the tile, per-head attention on (tq, T) score tiles,
#             per-head writes into a (tq, C) concat scratch, fused output
#             projection, lane-dense (tq, C) output store (+ optional attn).
# ---------------------------------------------------------------------------
def _mhsa_kernel(x_ref, wq_ref, wkv_ref, wp_ref, bp_ref, *rest,
                 nhead, head_size, d_model, q_tile,
                 has_mask, has_attn, compute_dtype, approx_recip):
    idx = 0
    mask_ref = None
    if has_mask:
        mask_ref = rest[idx]
        idx += 1
    out_ref = rest[idx]
    idx += 1
    attn_ref = None
    if has_attn:
        attn_ref = rest[idx]
        idx += 1
    kv_scr, q_scr, o_scr = rest[idx], rest[idx + 1], rest[idx + 2]

    C = d_model
    hs = head_size
    qi = pl.program_id(1)

    # ---- once per batch element: K|V projection into the resident scratch ----
    @pl.when(qi == 0)
    def _():
        kv = jnp.dot(x_ref[0], wkv_ref[...],
                     preferred_element_type=jnp.float32)             # (T, 2C)
        kv_scr[...] = kv.astype(kv_scr.dtype)

    # ---- per query tile: Q rows (1/sqrt(hs) already folded into wq) ----------
    row0 = pl.multiple_of(qi * q_tile, q_tile)
    x_rows = x_ref[0, pl.ds(row0, q_tile), :]                        # (tq, C)
    q_scr[...] = jnp.dot(x_rows, wq_ref[...],
                         preferred_element_type=jnp.float32).astype(q_scr.dtype)

    mask = mask_ref[...].astype(jnp.float32) if has_mask else None   # (tq, T)

    # Per-head attention.  Each iteration ends in stores (attn_ref / o_scr), so
    # no per-head value stays live across iterations.
    for h in range(nhead):
        lo = h * hs
        q_h = q_scr[:, lo:lo + hs]                                   # (tq, hs)
        k_h = kv_scr[:, lo:lo + hs]                                  # (T,  hs)
        v_h = kv_scr[:, C + lo:C + lo + hs]                          # (T,  hs)

        # q @ k^T without materializing a transpose; f32 MXU accumulation.
        scores = lax.dot_general(q_h, k_h, (((1,), (1,)), ((), ())),
                                 preferred_element_type=jnp.float32)  # (tq, T)
        if has_mask:
            scores = scores + mask

        # softmax over keys (f32 math)
        m = jnp.max(scores, axis=-1, keepdims=True)
        p = jnp.exp(scores - m)
        denom = jnp.sum(p, axis=-1, keepdims=True)
        inv = pl.reciprocal(denom, approx=approx_recip)              # (tq, 1)

        if has_attn:
            attn = p * inv
            attn_ref[0, h] = attn.astype(attn_ref.dtype)
            o_h = jnp.dot(attn.astype(compute_dtype), v_h,
                          preferred_element_type=jnp.float32)        # (tq, hs)
        else:
            # Normalize after PV: (tq, hs) multiplies instead of (tq, T).
            o_h = jnp.dot(p.astype(compute_dtype), v_h,
                          preferred_element_type=jnp.float32) * inv  # (tq, hs)

        o_scr[:, lo:lo + hs] = o_h.astype(o_scr.dtype)

    # Fused output projection on the concatenated head slab (one K=C matmul).
    y = jnp.dot(o_scr[...], wp_ref[...],
                preferred_element_type=jnp.float32)                  # (tq, C)
    y = y + bp_ref[...]
    out_ref[0] = y.astype(out_ref.dtype)


# ---------------------------------------------------------------------------
# Generation-aware VMEM budgeting / tile selection.
# ---------------------------------------------------------------------------
def _vmem_capacity_bytes():
    try:
        return int(pltpu.get_tpu_info().vmem_capacity_bytes)
    except Exception:                                    # pragma: no cover
        return 128 * 1024 * 1024


def _estimate_vmem_bytes(T, C, nhead, qt, cd_bytes, out_bytes, attn_bytes,
                         has_mask, has_attn):
    b = 2 * T * C * cd_bytes                             # x block (x2 buffers)
    b += 2 * (C * C + 2 * C * C + C * C) * cd_bytes      # wq | wkv | wp blocks
    if has_mask:
        b += 2 * qt * T * cd_bytes                       # mask block
    b += 2 * qt * C * out_bytes                          # output block
    if has_attn:
        b += 2 * nhead * qt * T * attn_bytes             # attention-prob block
    b += 2 * T * C * cd_bytes                            # K|V scratch (T, 2C)
    b += 2 * qt * C * cd_bytes                           # Q scratch + concat scratch
    b += 3 * qt * T * 4                                  # in-kernel f32 temporaries
    return b


def _pick_q_tile(T, C, nhead, cd_bytes, out_bytes, attn_bytes,
                 has_mask, has_attn, budget_bytes):
    if T <= 128:
        return T
    candidates = [c for c in (1024, 512, 256, 128) if c <= T and T % c == 0]
    for cand in candidates:
        if _estimate_vmem_bytes(T, C, nhead, cand, cd_bytes, out_bytes,
                                attn_bytes, has_mask, has_attn) <= budget_bytes:
            return cand
    return candidates[-1] if candidates else T


# ---------------------------------------------------------------------------
# Host wrapper.
# ---------------------------------------------------------------------------
def multi_head_self_attention(x, wq, wk, wv, wp, bp, mask=None, *,
                              compute_dtype=jnp.bfloat16,
                              return_attn=True, q_tile=None):
    """
    x  : (B, T, C)               float32
    wq, wk, wv : (nhead, hs, C)  per-head projection weights (no bias)
    wp : (C, C), bp : (C,)       output projection
    mask : optional (T, T) additive mask (shared across batch / heads)
    returns out (B,T,C) [, attn (B,nhead,T,T) in compute_dtype if return_attn]
    """
    B, T, C = x.shape
    nhead, hs, _ = wq.shape
    assert nhead * hs == C

    cd = jnp.dtype(compute_dtype)
    approx_recip = cd != jnp.dtype(jnp.float32)
    out_dtype = x.dtype
    attn_dtype = cd                           # bf16 attn on the fast path

    # Generation-aware VMEM budget (v7x: 64 MiB/TensorCore, v5e/v6e: 128 MiB).
    vmem_cap = _vmem_capacity_bytes()
    vmem_limit = min(int(vmem_cap * 0.82), vmem_cap - 16 * 1024 * 1024)
    vmem_limit = max(vmem_limit, 32 * 1024 * 1024)

    has_mask = mask is not None
    if q_tile is None:
        q_tile = _pick_q_tile(T, C, nhead, cd.itemsize,
                              jnp.dtype(out_dtype).itemsize,
                              jnp.dtype(attn_dtype).itemsize,
                              has_mask, return_attn,
                              int(vmem_limit * 0.9))
    assert T % q_tile == 0
    num_q = T // q_tile

    # Weight prep: per-head weights stacked and pre-transposed so the kernel
    # does plain row-major matmuls; 1/sqrt(hs) folded into Wq.  Column order
    # matches torch.cat(head_outputs, dim=-1): head0 | head1 | ...
    inv_scale = 1.0 / math.sqrt(hs)
    wq_t = (wq.reshape(C, C).T * inv_scale).astype(cd)                  # (C, C)
    wkv_t = jnp.concatenate([wk.reshape(C, C).T,
                             wv.reshape(C, C).T], axis=1).astype(cd)    # (C, 2C)
    wp_t = wp.T.astype(cd)                                              # (C, C)
    bp2 = bp.reshape(1, C).astype(jnp.float32)
    x_cd = x.astype(cd)

    if has_mask:
        mask = jnp.broadcast_to(mask, (T, T)).astype(cd)

    kernel = functools.partial(
        _mhsa_kernel, nhead=nhead, head_size=hs, d_model=C, q_tile=q_tile,
        has_mask=has_mask, has_attn=return_attn,
        compute_dtype=cd, approx_recip=approx_recip)

    in_specs = [
        pl.BlockSpec((1, T, C), lambda b, q: (b, 0, 0)),      # x (resident over q)
        pl.BlockSpec((C, C), lambda b, q: (0, 0)),            # Wq^T * inv_scale
        pl.BlockSpec((C, 2 * C), lambda b, q: (0, 0)),        # [Wk^T | Wv^T]
        pl.BlockSpec((C, C), lambda b, q: (0, 0)),            # Wp^T
        pl.BlockSpec((1, C), lambda b, q: (0, 0)),            # bias
    ]
    args = [x_cd, wq_t, wkv_t, wp_t, bp2]
    if has_mask:
        in_specs.append(pl.BlockSpec((q_tile, T), lambda b, q: (q, 0)))
        args.append(mask)

    if return_attn:
        out_shape = (jax.ShapeDtypeStruct((B, T, C), out_dtype),
                     jax.ShapeDtypeStruct((B, nhead, T, T), attn_dtype))
        out_specs = (
            pl.BlockSpec((1, q_tile, C), lambda b, q: (b, q, 0)),
            pl.BlockSpec((1, nhead, q_tile, T), lambda b, q: (b, 0, q, 0)),
        )
    else:
        out_shape = jax.ShapeDtypeStruct((B, T, C), out_dtype)
        out_specs = pl.BlockSpec((1, q_tile, C), lambda b, q: (b, q, 0))

    result = pl.pallas_call(
        kernel,
        grid=(B, num_q),
        in_specs=in_specs,
        out_specs=out_specs,
        out_shape=out_shape,
        scratch_shapes=[pltpu.VMEM((T, 2 * C), cd),    # K|V (resident over q)
                        pltpu.VMEM((q_tile, C), cd),   # Q rows of current tile
                        pltpu.VMEM((q_tile, C), cd)],  # concat(head outputs)
        compiler_params=pltpu.CompilerParams(
            # q axis must stay innermost + "arbitrary": the qi==0 K|V scratch
            # fill is reused sequentially by later query tiles of the batch.
            dimension_semantics=("parallel", "arbitrary"),
            vmem_limit_bytes=vmem_limit),
    )(*args)

    if return_attn:
        return result[0], result[1]
    return result


# ---------------------------------------------------------------------------
# Pure-JAX reference mirroring the PyTorch forward (eval mode).
# ---------------------------------------------------------------------------
def _reference(x, wq, wk, wv, wp, bp, mask=None):
    B, T, C = x.shape
    nhead, hs, _ = wq.shape
    scale = math.sqrt(hs)
    q = jnp.einsum("btc,nhc->bnth", x, wq)
    k = jnp.einsum("btc,nhc->bnth", x, wk)
    v = jnp.einsum("btc,nhc->bnth", x, wv)
    scores = jnp.einsum("bnqh,bnkh->bnqk", q, k) / scale
    if mask is not None:
        scores = scores + mask
    attn = jax.nn.softmax(scores, axis=-1)
    out_h = jnp.einsum("bnqk,bnkh->bnqh", attn, v)
    concat = jnp.transpose(out_h, (0, 2, 1, 3)).reshape(B, T, C)
    return concat @ wp.T + bp, attn


if __name__ == "__main__":
    # Small shapes: B=2, T=8, d_model=32, nhead=4 (head_size=8)
    B, T, C, nhead = 2, 8, 32, 4
    hs = C // nhead

    key = jax.random.PRNGKey(0)
    kx, kq, kk, kv, kw, kb = jax.random.split(key, 6)

    x = jax.random.normal(kx, (B, T, C), dtype=jnp.float32)
    bound = 1.0 / math.sqrt(C)
    wq = jax.random.uniform(kq, (nhead, hs, C), jnp.float32, -bound, bound)
    wk = jax.random.uniform(kk, (nhead, hs, C), jnp.float32, -bound, bound)
    wv = jax.random.uniform(kv, (nhead, hs, C), jnp.float32, -bound, bound)
    wp = jax.random.uniform(kw, (C, C), jnp.float32, -bound, bound)
    bp = jax.random.uniform(kb, (C,), jnp.float32, -bound, bound)

    causal = jnp.where(jnp.tril(jnp.ones((T, T), dtype=bool)),
                       0.0, -1e9).astype(jnp.float32)

    for mask in (None, causal):
        ref_out, ref_attn = _reference(x, wq, wk, wv, wp, bp, mask)

        # f32 compute path.  Tolerance is moderate because the 1/sqrt(hs)
        # scale is folded into Wq and the TPU MXU reorders rounding relative
        # to the XLA reference.
        out, attn = multi_head_self_attention(
            x, wq, wk, wv, wp, bp, mask, compute_dtype=jnp.float32)
        out = jax.block_until_ready(out)
        attn = jax.block_until_ready(attn)
        assert out.shape == (B, T, C)
        assert attn.shape == (B, nhead, T, T)
        assert jnp.allclose(out, ref_out, atol=2e-2, rtol=2e-2)
        assert jnp.allclose(attn.astype(jnp.float32), ref_attn,
                            atol=2e-2, rtol=2e-2)

        # fast path: bf16 matmul operands, bf16 attn storage, approx recip.
        out_bf, attn_bf = multi_head_self_attention(
            x, wq, wk, wv, wp, bp, mask, compute_dtype=jnp.bfloat16)
        out_bf = jax.block_until_ready(out_bf)
        attn_bf = jax.block_until_ready(attn_bf)
        assert jnp.allclose(out_bf, ref_out, atol=5e-2, rtol=5e-2)
        assert jnp.allclose(attn_bf.astype(jnp.float32), ref_attn,
                            atol=5e-2, rtol=5e-2)

    # fastest path: no attention-probability output (drops O(B*H*T^2) HBM
    # writeback; normalization folded after the PV matmul).
    out_only = multi_head_self_attention(
        x, wq, wk, wv, wp, bp, None,
        compute_dtype=jnp.bfloat16, return_attn=False)
    out_only = jax.block_until_ready(out_only)
    assert out_only.shape == (B, T, C)
    assert jnp.allclose(out_only, _reference(x, wq, wk, wv, wp, bp, None)[0],
                        atol=5e-2, rtol=5e-2)

    print("KERNEL_OK")
</pallas_src>

<mosaic_0001>
module attributes {stable_mosaic.version = 11 : i64} {
  func.func @_mhsa_kernel(%arg0: i32, %arg1: i32, %arg2: memref<1x8x32xf32, #tpu.memory_space<vmem>>, %arg3: memref<32x32xf32, #tpu.memory_space<vmem>>, %arg4: memref<32x64xf32, #tpu.memory_space<vmem>>, %arg5: memref<32x32xf32, #tpu.memory_space<vmem>>, %arg6: memref<1x32xf32, #tpu.memory_space<vmem>>, %arg7: memref<1x8x32xf32, #tpu.memory_space<vmem>>, %arg8: memref<1x4x8x8xf32, #tpu.memory_space<vmem>>, %arg9: memref<8x64xf32, #tpu.memory_space<vmem>>, %arg10: memref<8x32xf32, #tpu.memory_space<vmem>>, %arg11: memref<8x32xf32, #tpu.memory_space<vmem>>) attributes {dimension_semantics = [#tpu.dimension_semantics<parallel>, #tpu.dimension_semantics<arbitrary>], iteration_bounds = array<i64: 2, 1>, scalar_prefetch = 0 : i64, scratch_operands = 3 : i64, tpu.core_type = #tpu.core_type<tc>, window_params = [{transform_indices = @transform_0, window_bounds = array<i64: 1, 8, 32>}, {pipeline_mode = #tpu.pipeline_mode<synchronous>, transform_indices = @transform_1, window_bounds = array<i64: 32, 32>}, {pipeline_mode = #tpu.pipeline_mode<synchronous>, transform_indices = @transform_2, window_bounds = array<i64: 32, 64>}, {pipeline_mode = #tpu.pipeline_mode<synchronous>, transform_indices = @transform_3, window_bounds = array<i64: 32, 32>}, {pipeline_mode = #tpu.pipeline_mode<synchronous>, transform_indices = @transform_4, window_bounds = array<i64: 1, 32>}, {transform_indices = @transform_5, window_bounds = array<i64: 1, 8, 32>}, {transform_indices = @transform_6, window_bounds = array<i64: 1, 4, 8, 8>}]} {
    %c0_i32 = arith.constant 0 : i32
    %0 = arith.cmpi eq, %arg1, %c0_i32 : i32
    %1 = arith.extui %0 : i1 to i32
    %c0_i32_0 = arith.constant 0 : i32
    %2 = arith.cmpi ne, %1, %c0_i32_0 : i32
    scf.if %2 {
      %c0_70 = arith.constant 0 : index
      %c0_71 = arith.constant 0 : index
      %c0_72 = arith.constant 0 : index
      %96 = vector.load %arg2[%c0_70, %c0_71, %c0_72] : memref<1x8x32xf32, #tpu.memory_space<vmem>>, vector<1x8x32xf32>
      %97 = vector.shape_cast %96 : vector<1x8x32xf32> to vector<8x32xf32>
      %c0_73 = arith.constant 0 : index
      %c0_74 = arith.constant 0 : index
      %98 = vector.load %arg4[%c0_73, %c0_74] : memref<32x64xf32, #tpu.memory_space<vmem>>, vector<32x64xf32>
      %cst_75 = arith.constant dense<0.000000e+00> : vector<8x64xf32>
      %99 = tpu.matmul %97, %98, %cst_75 {dimension_numbers = #tpu.dot_dimension_numbers<[1], [0], [0], [1], [0, 0, 1, 1], [], []>} : vector<8x32xf32>, vector<32x64xf32>, vector<8x64xf32> -> vector<8x64xf32>
      %c0_76 = arith.constant 0 : index
      %c0_77 = arith.constant 0 : index
      %100 = vector.load %arg9[%c0_76, %c0_77] : memref<8x64xf32, #tpu.memory_space<vmem>>, vector<8x64xf32>
      tpu.vector_store %arg9[%c0_76, %c0_77], %99 {strides = array<i32>} : memref<8x64xf32, #tpu.memory_space<vmem>>, vector<8x64xf32>,
    } else {
    }
    %c8_i32 = arith.constant 8 : i32
    %3 = arith.muli %arg1, %c8_i32 : i32
    %4 = tpu.assume_multiple %3, 8 : i32
    %c0 = arith.constant 0 : index
    %5 = arith.index_cast %4 : i32 to index
    %c0_1 = arith.constant 0 : index
    %6 = vector.load %arg2[%c0, %5, %c0_1] : memref<1x8x32xf32, #tpu.memory_space<vmem>>, vector<1x8x32xf32>
    %7 = vector.shape_cast %6 : vector<1x8x32xf32> to vector<8x32xf32>
    %c0_2 = arith.constant 0 : index
    %c0_3 = arith.constant 0 : index
    %8 = vector.load %arg3[%c0_2, %c0_3] : memref<32x32xf32, #tpu.memory_space<vmem>>, vector<32x32xf32>
    %cst = arith.constant dense<0.000000e+00> : vector<8x32xf32>
    %9 = tpu.matmul %7, %8, %cst {dimension_numbers = #tpu.dot_dimension_numbers<[1], [0], [0], [1], [0, 0, 1, 1], [], []>} : vector<8x32xf32>, vector<32x32xf32>, vector<8x32xf32> -> vector<8x32xf32>
    %c0_4 = arith.constant 0 : index
    %c0_5 = arith.constant 0 : index
    %10 = vector.load %arg10[%c0_4, %c0_5] : memref<8x32xf32, #tpu.memory_space<vmem>>, vector<8x32xf32>
    tpu.vector_store %arg10[%c0_4, %c0_5], %9 {strides = array<i32>} : memref<8x32xf32, #tpu.memory_space<vmem>>, vector<8x32xf32>,
    %c0_6 = arith.constant 0 : index
    %c0_7 = arith.constant 0 : index
    %11 = vector.load %arg10[%c0_6, %c0_7] : memref<8x32xf32, #tpu.memory_space<vmem>>, vector<8x8xf32>
    %c0_8 = arith.constant 0 : index
    %c0_9 = arith.constant 0 : index
    %12 = vector.load %arg9[%c0_8, %c0_9] : memref<8x64xf32, #tpu.memory_space<vmem>>, vector<8x8xf32>
    %c0_10 = arith.constant 0 : index
    %c32 = arith.constant 32 : index
    %13 = vector.load %arg9[%c0_10, %c32] : memref<8x64xf32, #tpu.memory_space<vmem>>, vector<8x8xf32>
    %cst_11 = arith.constant dense<0.000000e+00> : vector<8x8xf32>
    %14 = tpu.matmul %11, %12, %cst_11 {dimension_numbers = #tpu.dot_dimension_numbers<[1], [1], [0], [0], [0, 0, 1, 0], [], []>} : vector<8x8xf32>, vector<8x8xf32>, vector<8x8xf32> -> vector<8x8xf32>
    %cst_12 = arith.constant dense<0xFF800000> : vector<8xf32>
    %15 = vector.multi_reduction <maximumf>, %14, %cst_12 [1] : vector<8x8xf32> to vector<8xf32>
    %16 = vector.shape_cast %15 : vector<8xf32> to vector<8x1xf32>
    %17 = vector.broadcast %16 : vector<8x1xf32> to vector<8x8xf32>
    %18 = arith.subf %14, %17 : vector<8x8xf32>
    %19 = math.exp %18 : vector<8x8xf32>
    %cst_13 = arith.constant dense<0.000000e+00> : vector<8xf32>
    %20 = vector.multi_reduction <add>, %19, %cst_13 [1] : vector<8x8xf32> to vector<8xf32>
    %21 = vector.shape_cast %20 : vector<8xf32> to vector<8x1xf32>
    %22 = tpu.reciprocal %21 : vector<8x1xf32> -> vector<8x1xf32>
    %23 = vector.broadcast %22 : vector<8x1xf32> to vector<8x8xf32>
    %24 = arith.mulf %19, %23 : vector<8x8xf32>
    %c0_14 = arith.constant 0 : index
    %c0_15 = arith.constant 0 : index
    %c0_16 = arith.constant 0 : index
    %c0_17 = arith.constant 0 : index
    %25 = vector.load %arg8[%c0_14, %c0_15, %c0_16, %c0_17] : memref<1x4x8x8xf32, #tpu.memory_space<vmem>>, vector<1x1x8x8xf32>
    %26 = vector.shape_cast %25 : vector<1x1x8x8xf32> to vector<8x8xf32>
    %27 = vector.shape_cast %24 : vector<8x8xf32> to vector<1x1x8x8xf32>
    tpu.vector_store %arg8[%c0_14, %c0_15, %c0_16, %c0_17], %27 {strides = array<i32>} : memref<1x4x8x8xf32, #tpu.memory_space<vmem>>, vector<1x1x8x8xf32>,
    %cst_18 = arith.constant dense<0.000000e+00> : vector<8x8xf32>
    %28 = tpu.matmul %24, %13, %cst_18 {dimension_numbers = #tpu.dot_dimension_numbers<[1], [0], [0], [1], [0, 0, 1, 1], [], []>} : vector<8x8xf32>, vector<8x8xf32>, vector<8x8xf32> -> vector<8x8xf32>
    %c0_19 = arith.constant 0 : index
    %c0_20 = arith.constant 0 : index
    %29 = vector.load %arg11[%c0_19, %c0_20] : memref<8x32xf32, #tpu.memory_space<vmem>>, vector<8x8xf32>
    tpu.vector_store %arg11[%c0_19, %c0_20], %28 {strides = array<i32>} : memref<8x32xf32, #tpu.memory_space<vmem>>, vector<8x8xf32>,
    %c0_21 = arith.constant 0 : index
    %c8 = arith.constant 8 : index
    %30 = vector.load %arg10[%c0_21, %c8] : memref<8x32xf32, #tpu.memory_space<vmem>>, vector<8x8xf32>
    %c0_22 = arith.constant 0 : index
    %c8_23 = arith.constant 8 : index
    %31 = vector.load %arg9[%c0_22, %c8_23] : memref<8x64xf32, #tpu.memory_space<vmem>>, vector<8x8xf32>
    %c0_24 = arith.constant 0 : index
    %c40 = arith.constant 40 : index
    %32 = vector.load %arg9[%c0_24, %c40] : memref<8x64xf32, #tpu.memory_space<vmem>>, vector<8x8xf32>
    %cst_25 = arith.constant dense<0.000000e+00> : vector<8x8xf32>
    %33 = tpu.matmul %30, %31, %cst_25 {dimension_numbers = #tpu.dot_dimension_numbers<[1], [1], [0], [0], [0, 0, 1, 0], [], []>} : vector<8x8xf32>, vector<8x8xf32>, vector<8x8xf32> -> vector<8x8xf32>
    %cst_26 = arith.constant dense<0xFF800000> : vector<8xf32>
    %34 = vector.multi_reduction <maximumf>, %33, %cst_26 [1] : vector<8x8xf32> to vector<8xf32>
    %35 = vector.shape_cast %34 : vector<8xf32> to vector<8x1xf32>
    %36 = vector.broadcast %35 : vector<8x1xf32> to vector<8x8xf32>
    %37 = arith.subf %33, %36 : vector<8x8xf32>
    %38 = math.exp %37 : vector<8x8xf32>
    %cst_27 = arith.constant dense<0.000000e+00> : vector<8xf32>
    %39 = vector.multi_reduction <add>, %38, %cst_27 [1] : vector<8x8xf32> to vector<8xf32>
    %40 = vector.shape_cast %39 : vector<8xf32> to vector<8x1xf32>
    %41 = tpu.reciprocal %40 : vector<8x1xf32> -> vector<8x1xf32>
    %42 = vector.broadcast %41 : vector<8x1xf32> to vector<8x8xf32>
    %43 = arith.mulf %38, %42 : vector<8x8xf32>
    %c0_28 = arith.constant 0 : index
    %c1 = arith.constant 1 : index
    %c0_29 = arith.constant 0 : index
    %c0_30 = arith.constant 0 : index
    %44 = vector.load %arg8[%c0_28, %c1, %c0_29, %c0_30] : memref<1x4x8x8xf32, #tpu.memory_space<vmem>>, vector<1x1x8x8xf32>
    %45 = vector.shape_cast %44 : vector<1x1x8x8xf32> to vector<8x8xf32>
    %46 = vector.shape_cast %43 : vector<8x8xf32> to vector<1x1x8x8xf32>
    tpu.vector_store %arg8[%c0_28, %c1, %c0_29, %c0_30], %46 {strides = array<i32>} : memref<1x4x8x8xf32, #tpu.memory_space<vmem>>, vector<1x1x8x8xf32>,
    %cst_31 = arith.constant dense<0.000000e+00> : vector<8x8xf32>
    %47 = tpu.matmul %43, %32, %cst_31 {dimension_numbers = #tpu.dot_dimension_numbers<[1], [0], [0], [1], [0, 0, 1, 1], [], []>} : vector<8x8xf32>, vector<8x8xf32>, vector<8x8xf32> -> vector<8x8xf32>
    %c0_32 = arith.constant 0 : index
    %c8_33 = arith.constant 8 : index
    %48 = vector.load %arg11[%c0_32, %c8_33] : memref<8x32xf32, #tpu.memory_space<vmem>>, vector<8x8xf32>
    tpu.vector_store %arg11[%c0_32, %c8_33], %47 {strides = array<i32>} : memref<8x32xf32, #tpu.memory_space<vmem>>, vector<8x8xf32>,
    %c0_34 = arith.constant 0 : index
    %c16 = arith.constant 16 : index
    %49 = vector.load %arg10[%c0_34, %c16] : memref<8x32xf32, #tpu.memory_space<vmem>>, vector<8x8xf32>
    %c0_35 = arith.constant 0 : index
    %c16_36 = arith.constant 16 : index
    %50 = vector.load %arg9[%c0_35, %c16_36] : memref<8x64xf32, #tpu.memory_space<vmem>>, vector<8x8xf32>
    %c0_37 = arith.constant 0 : index
    %c48 = arith.constant 48 : index
    %51 = vector.load %arg9[%c0_37, %c48] : memref<8x64xf32, #tpu.memory_space<vmem>>, vector<8x8xf32>
    %cst_38 = arith.constant dense<0.000000e+00> : vector<8x8xf32>
    %52 = tpu.matmul %49, %50, %cst_38 {dimension_numbers = #tpu.dot_dimension_numbers<[1], [1], [0], [0], [0, 0, 1, 0], [], []>} : vector<8x8xf32>, vector<8x8xf32>, vector<8x8xf32> -> vector<8x8xf32>
    %cst_39 = arith.constant dense<0xFF800000> : vector<8xf32>
    %53 = vector.multi_reduction <maximumf>, %52, %cst_39 [1] : vector<8x8xf32> to vector<8xf32>
    %54 = vector.shape_cast %53 : vector<8xf32> to vector<8x1xf32>
    %55 = vector.broadcast %54 : vector<8x1xf32> to vector<8x8xf32>
    %56 = arith.subf %52, %55 : vector<8x8xf32>
    %57 = math.exp %56 : vector<8x8xf32>
    %cst_40 = arith.constant dense<0.000000e+00> : vector<8xf32>
    %58 = vector.multi_reduction <add>, %57, %cst_40 [1] : vector<8x8xf32> to vector<8xf32>
    %59 = vector.shape_cast %58 : vector<8xf32> to vector<8x1xf32>
    %60 = tpu.reciprocal %59 : vector<8x1xf32> -> vector<8x1xf32>
    %61 = vector.broadcast %60 : vector<8x1xf32> to vector<8x8xf32>
    %62 = arith.mulf %57, %61 : vector<8x8xf32>
    %c0_41 = arith.constant 0 : index
    %c2 = arith.constant 2 : index
    %c0_42 = arith.constant 0 : index
    %c0_43 = arith.constant 0 : index
    %63 = vector.load %arg8[%c0_41, %c2, %c0_42, %c0_43] : memref<1x4x8x8xf32, #tpu.memory_space<vmem>>, vector<1x1x8x8xf32>
    %64 = vector.shape_cast %63 : vector<1x1x8x8xf32> to vector<8x8xf32>
    %65 = vector.shape_cast %62 : vector<8x8xf32> to vector<1x1x8x8xf32>
    tpu.vector_store %arg8[%c0_41, %c2, %c0_42, %c0_43], %65 {strides = array<i32>} : memref<1x4x8x8xf32, #tpu.memory_space<vmem>>, vector<1x1x8x8xf32>,
    %cst_44 = arith.constant dense<0.000000e+00> : vector<8x8xf32>
    %66 = tpu.matmul %62, %51, %cst_44 {dimension_numbers = #tpu.dot_dimension_numbers<[1], [0], [0], [1], [0, 0, 1, 1], [], []>} : vector<8x8xf32>, vector<8x8xf32>, vector<8x8xf32> -> vector<8x8xf32>
    %c0_45 = arith.constant 0 : index
    %c16_46 = arith.constant 16 : index
    %67 = vector.load %arg11[%c0_45, %c16_46] : memref<8x32xf32, #tpu.memory_space<vmem>>, vector<8x8xf32>
    tpu.vector_store %arg11[%c0_45, %c16_46], %66 {strides = array<i32>} : memref<8x32xf32, #tpu.memory_space<vmem>>, vector<8x8xf32>,
    %c0_47 = arith.constant 0 : index
    %c24 = arith.constant 24 : index
    %68 = vector.load %arg10[%c0_47, %c24] : memref<8x32xf32, #tpu.memory_space<vmem>>, vector<8x8xf32>
    %c0_48 = arith.constant 0 : index
    %c24_49 = arith.constant 24 : index
    %69 = vector.load %arg9[%c0_48, %c24_49] : memref<8x64xf32, #tpu.memory_space<vmem>>, vector<8x8xf32>
    %c0_50 = arith.constant 0 : index
    %c56 = arith.constant 56 : index
    %70 = vector.load %arg9[%c0_50, %c56] : memref<8x64xf32, #tpu.memory_space<vmem>>, vector<8x8xf32>
    %cst_51 = arith.constant dense<0.000000e+00> : vector<8x8xf32>
    %71 = tpu.matmul %68, %69, %cst_51 {dimension_numbers = #tpu.dot_dimension_numbers<[1], [1], [0], [0], [0, 0, 1, 0], [], []>} : vector<8x8xf32>, vector<8x8xf32>, vector<8x8xf32> -> vector<8x8xf32>
    %cst_52 = arith.constant dense<0xFF800000> : vector<8xf32>
    %72 = vector.multi_reduction <maximumf>, %71, %cst_52 [1] : vector<8x8xf32> to vector<8xf32>
    %73 = vector.shape_cast %72 : vector<8xf32> to vector<8x1xf32>
    %74 = vector.broadcast %73 : vector<8x1xf32> to vector<8x8xf32>
    %75 = arith.subf %71, %74 : vector<8x8xf32>
    %76 = math.exp %75 : vector<8x8xf32>
    %cst_53 = arith.constant dense<0.000000e+00> : vector<8xf32>
    %77 = vector.multi_reduction <add>, %76, %cst_53 [1] : vector<8x8xf32> to vector<8xf32>
    %78 = vector.shape_cast %77 : vector<8xf32> to vector<8x1xf32>
    %79 = tpu.reciprocal %78 : vector<8x1xf32> -> vector<8x1xf32>
    %80 = vector.broadcast %79 : vector<8x1xf32> to vector<8x8xf32>
    %81 = arith.mulf %76, %80 : vector<8x8xf32>
    %c0_54 = arith.constant 0 : index
    %c3 = arith.constant 3 : index
    %c0_55 = arith.constant 0 : index
    %c0_56 = arith.constant 0 : index
    %82 = vector.load %arg8[%c0_54, %c3, %c0_55, %c0_56] : memref<1x4x8x8xf32, #tpu.memory_space<vmem>>, vector<1x1x8x8xf32>
    %83 = vector.shape_cast %82 : vector<1x1x8x8xf32> to vector<8x8xf32>
    %84 = vector.shape_cast %81 : vector<8x8xf32> to vector<1x1x8x8xf32>
    tpu.vector_store %arg8[%c0_54, %c3, %c0_55, %c0_56], %84 {strides = array<i32>} : memref<1x4x8x8xf32, #tpu.memory_space<vmem>>, vector<1x1x8x8xf32>,
    %cst_57 = arith.constant dense<0.000000e+00> : vector<8x8xf32>
    %85 = tpu.matmul %81, %70, %cst_57 {dimension_numbers = #tpu.dot_dimension_numbers<[1], [0], [0], [1], [0, 0, 1, 1], [], []>} : vector<8x8xf32>, vector<8x8xf32>, vector<8x8xf32> -> vector<8x8xf32>
    %c0_58 = arith.constant 0 : index
    %c24_59 = arith.constant 24 : index
    %86 = vector.load %arg11[%c0_58, %c24_59] : memref<8x32xf32, #tpu.memory_space<vmem>>, vector<8x8xf32>
    tpu.vector_store %arg11[%c0_58, %c24_59], %85 {strides = array<i32>} : memref<8x32xf32, #tpu.memory_space<vmem>>, vector<8x8xf32>,
    %c0_60 = arith.constant 0 : index
    %c0_61 = arith.constant 0 : index
    %87 = vector.load %arg11[%c0_60, %c0_61] : memref<8x32xf32, #tpu.memory_space<vmem>>, vector<8x32xf32>
    %c0_62 = arith.constant 0 : index
    %c0_63 = arith.constant 0 : index
    %88 = vector.load %arg5[%c0_62, %c0_63] : memref<32x32xf32, #tpu.memory_space<vmem>>, vector<32x32xf32>
    %cst_64 = arith.constant dense<0.000000e+00> : vector<8x32xf32>
    %89 = tpu.matmul %87, %88, %cst_64 {dimension_numbers = #tpu.dot_dimension_numbers<[1], [0], [0], [1], [0, 0, 1, 1], [], []>} : vector<8x32xf32>, vector<32x32xf32>, vector<8x32xf32> -> vector<8x32xf32>
    %c0_65 = arith.constant 0 : index
    %c0_66 = arith.constant 0 : index
    %90 = vector.load %arg6[%c0_65, %c0_66] : memref<1x32xf32, #tpu.memory_space<vmem>>, vector<1x32xf32>
    %91 = vector.broadcast %90 : vector<1x32xf32> to vector<8x32xf32>
    %92 = arith.addf %89, %91 : vector<8x32xf32>
    %c0_67 = arith.constant 0 : index
    %c0_68 = arith.constant 0 : index
    %c0_69 = arith.constant 0 : index
    %93 = vector.load %arg7[%c0_67, %c0_68, %c0_69] : memref<1x8x32xf32, #tpu.memory_space<vmem>>, vector<1x8x32xf32>
    %94 = vector.shape_cast %93 : vector<1x8x32xf32> to vector<8x32xf32>
    %95 = vector.shape_cast %92 : vector<8x32xf32> to vector<1x8x32xf32>
    tpu.vector_store %arg7[%c0_67, %c0_68, %c0_69], %95 {strides = array<i32>} : memref<1x8x32xf32, #tpu.memory_space<vmem>>, vector<1x8x32xf32>,
    return
  }
  func.func @transform_0(%arg0: i32, %arg1: i32) -> (i32, i32, i32) {
    %c0_i32 = arith.constant 0 : i32
    %c0_i32_0 = arith.constant 0 : i32
    %c0_i32_1 = arith.constant 0 : i32
    return %arg0, %c0_i32, %c0_i32_0 : i32, i32, i32
  }
  func.func @transform_1(%arg0: i32, %arg1: i32) -> (i32, i32) {
    %c0_i32 = arith.constant 0 : i32
    %c0_i32_0 = arith.constant 0 : i32
    %c0_i32_1 = arith.constant 0 : i32
    return %c0_i32, %c0_i32_0 : i32, i32
  }
  func.func @transform_2(%arg0: i32, %arg1: i32) -> (i32, i32) {
    %c0_i32 = arith.constant 0 : i32
    %c0_i32_0 = arith.constant 0 : i32
    %c0_i32_1 = arith.constant 0 : i32
    return %c0_i32, %c0_i32_0 : i32, i32
  }
  func.func @transform_3(%arg0: i32, %arg1: i32) -> (i32, i32) {
    %c0_i32 = arith.constant 0 : i32
    %c0_i32_0 = arith.constant 0 : i32
    %c0_i32_1 = arith.constant 0 : i32
    return %c0_i32, %c0_i32_0 : i32, i32
  }
  func.func @transform_4(%arg0: i32, %arg1: i32) -> (i32, i32) {
    %c0_i32 = arith.constant 0 : i32
    %c0_i32_0 = arith.constant 0 : i32
    %c0_i32_1 = arith.constant 0 : i32
    return %c0_i32, %c0_i32_0 : i32, i32
  }
  func.func @transform_5(%arg0: i32, %arg1: i32) -> (i32, i32, i32) {
    %c0_i32 = arith.constant 0 : i32
    %c0_i32_0 = arith.constant 0 : i32
    return %arg0, %arg1, %c0_i32 : i32, i32, i32
  }
  func.func @transform_6(%arg0: i32, %arg1: i32) -> (i32, i32, i32, i32) {
    %c0_i32 = arith.constant 0 : i32
    %c0_i32_0 = arith.constant 0 : i32
    %c0_i32_1 = arith.constant 0 : i32
    return %arg0, %c0_i32, %arg1, %c0_i32_0 : i32, i32, i32, i32
  }
}

</mosaic_0001>

<llo_original>
// kernel: tpu_custom_call.1
$region0: #{tpu_custom_call.1}
  #allocation0 [shape = 'u32[]', space=smem, size = 0x4, offset = 0x4, fixed_abs, tag = 'smem constant byte address 0x4 - core index']
  #allocation1 [shape = 'u32[144,128]{1,0:T(1,128)}', space=vmem, size = 0x12000, scoped, tag = 'internal scratch']
  #allocation2 [shape = 'f32[8,64]{1,0:T(8,128)}', space=vmem, size = 0x1000, scoped, tag = 'scratch operand']
  #allocation3 [shape = 'f32[8,32]{1,0:T(8,128)}', space=vmem, size = 0x1000, scoped, tag = 'scratch operand']
  #allocation4 [shape = 'f32[8,32]{1,0:T(8,128)}', space=vmem, size = 0x1000, scoped, tag = 'scratch operand']
  %s0 = inlined_call_operand.hbm [shape: f32[2,8,32], index: 0, kind: input, shape index: {}]
  %s1 = inlined_call_operand.hbm [shape: f32[32,32], index: 1, kind: input, shape index: {}]
  %s2 = inlined_call_operand.hbm [shape: f32[32,64], index: 2, kind: input, shape index: {}]
  %s3 = inlined_call_operand.hbm [shape: f32[32,32], index: 3, kind: input, shape index: {}]
  %s4 = inlined_call_operand.hbm [shape: f32[1,32], index: 4, kind: input, shape index: {}]
  %s5 = inlined_call_operand.hbm [shape: f32[2,8,32], index: 5, kind: output, shape index: {0}]
  %s6 = inlined_call_operand.hbm [shape: f32[2,4,8,8], index: 6, kind: output, shape index: {1}]
  %7 = xla_tuple %s5, %s6
  %s8 = sld [smem:[#allocation0]]
  $region85: #{tpu_custom_call.1} parent=0
    _
  %s10 = ssub.s32 1, %s8
  %s11 = scalar_select 0, %s10, %s8
  $region1: #{tpu_custom_call.1} parent=0
    #allocation5 [shape = 'u8[8192]{0}', space=vmem, size = 0x2000, scoped, tag = 'input window, operand 0']
    #allocation6 [shape = 's32[2]{0}', space=sflag, size = 0x8, scoped, tag = 'scoped memory for tpu_custom_call.1']
    #allocation7 [shape = 's32[2]{0}', space=sflag, size = 0x8, scoped, tag = 'scoped memory for tpu_custom_call.1']
    #allocation8 [shape = 'u8[16384]{0}', space=vmem, size = 0x4000, scoped, tag = 'input window, operand 1, single buffered']
    #allocation9 [shape = 's32[1]{0}', space=sflag, size = 0x4, scoped, tag = 'scoped memory for tpu_custom_call.1']
    #allocation10 [shape = 'u8[16384]{0}', space=vmem, size = 0x4000, scoped, tag = 'input window, operand 2, single buffered']
    #allocation11 [shape = 'u8[16384]{0}', space=vmem, size = 0x4000, scoped, tag = 'input window, operand 3, single buffered']
    #allocation12 [shape = 's32[1]{0}', space=sflag, size = 0x4, scoped, tag = 'scoped memory for tpu_custom_call.1']
    #allocation13 [shape = 'u8[512]{0}', space=vmem, size = 0x400, scoped, tag = 'input window, operand 4, single buffered']
    #allocation14 [shape = 'u8[8192]{0}', space=vmem, size = 0x2000, scoped, tag = 'output window, operand 0']
    #allocation15 [shape = 'u8[32768]{0}', space=vmem, size = 0x8000, scoped, tag = 'output window, operand 1']
    #allocation16 [shape = 's32[2]{0}', space=sflag, size = 0x8, scoped, tag = 'scoped memory for tpu_custom_call.1']
    %12 = vsyncpa [#allocation6], 0
    %s13 = scalar_lea.sflag [#allocation6], 1
    %14 = vsyncpa %s13, 0
    %15 = vsyncpa [#allocation9], 0
    %16 = vsyncpa [#allocation12], 0
    %17 = vsyncpa [#allocation7], 0
    %s18 = scalar_lea.sflag [#allocation7], 1
    %19 = vsyncpa %s18, 0
    %20 = vsyncpa [#allocation16], 0
    %s21 = scalar_lea.sflag [#allocation16], 1
    %22 = vsyncpa %s21, 0
    loop: start=0, step=1, limit=4
    $region2: #{tpu_custom_call.1} parent=1 // loop_pre_header
      _
    $region3: #{tpu_custom_call.1} parent=1 // loop_header
      %s24 = sphi 0, %s28
      %p25 = scmp.ge.s32.totalorder %s24, 4
      %s31 = sphi 0, %s43
      %s32 = sphi 0, %s39
      %s33 = sphi 0, %s31
      %s34 = sphi 0, %s32
      %s35 = sphi 0, %s33
      %s36 = sphi 0, %s34
      %s46 = sphi 0, %s48
      %s49 = sphi 0, %s46
      %s50 = sphi 0, %s49
      %s66 = sphi 0, %s50
      %s70 = sphi 0, %s70
      %s72 = sphi 0, %s70
      %s73 = sphi 0, %s72
      %s87 = sphi 0, %s73
      %s91 = sphi 0, %s91
      %s93 = sphi 0, %s91
      %s94 = sphi 0, %s93
      %s108 = sphi 0, %s94
      %s112 = sphi 0, %s112
      %s114 = sphi 0, %s112
      %s115 = sphi 0, %s114
      %s129 = sphi 0, %s115
      %s133 = sphi 0, %s133
      %s135 = sphi 0, %s133
      %s136 = sphi 0, %s135
      %s150 = sphi 0, %s136
      %s158 = sphi 0, %s160
      %s161 = sphi 0, %s158
      %s162 = sphi 0, %s161
      %s178 = sphi 0, %s162
      %s186 = sphi 0, %s188
      %s189 = sphi 0, %s186
      %s190 = sphi 0, %s189
      %s206 = sphi 0, %s190
    $region4: #{tpu_custom_call.1} parent=1 // loop_header_branch
      %27 = sbr.rel (%p25) target = $region8
    $region5: #{tpu_custom_call.1} parent=1 // loop_body
      %s29 = ssub.s32 %s24, 1
      %s30 = ssub.s32 %s24, 2
      %s37 = sadd.s32 1, %s32
      %p38 = scmp.ge.s32.totalorder %s37, 1
      %s39 = scalar_select %p38, 0, %s37
      %s40 = sadd.s32 1, %s31
      %s41 = scalar_select %p38, %s40, %s31
      %p42 = scmp.ge.s32.totalorder %s41, 2
      %s43 = scalar_select %p42, 0, %s41
      %s44 = ssub.s32 %s31, %s43
      %p45 = scmp.eq.s32.totalorder %s44, 0
      %s47 = sadd.s32 %s46, 1
      %s48 = scalar_select %p45, %s46, %s47
      %p51 = pneg %p45
      %p52 = scmp.eq.s32.totalorder %s24, 1
      %p53 = por %p51, %p52
      %p54 = scmp.ne.s32.totalorder %s46, %s49
      %p55 = scmp.eq.s32.totalorder %s24, 0
      %p56 = por %p54, %p55
      %p57 = scmp.ne.s32.totalorder %s46, %s49
      %p58 = scmp.eq.s32.totalorder %s29, 1
      %p59 = por %p57, %p58
      %p60 = scmp.ne.s32.totalorder %s49, %s50
      %p61 = scmp.eq.s32.totalorder %s29, 0
      %p62 = por %p60, %p61
      %p63 = scmp.ne.s32.totalorder %s49, %s50
      %p64 = scmp.eq.s32.totalorder %s30, 1
      %p65 = por %p63, %p64
      %p67 = scmp.ne.s32.totalorder %s50, %s66
      %p68 = scmp.eq.s32.totalorder %s30, 0
      %p69 = por %p67, %p68
      %s71 = sadd.s32 %s70, 1
      %p74 = scmp.eq.s32.totalorder %s24, 1
      %p75 = scmp.ne.s32.totalorder %s70, %s72
      %p76 = scmp.eq.s32.totalorder %s24, 0
      %p77 = por %p75, %p76
      %p78 = scmp.ne.s32.totalorder %s70, %s72
      %p79 = scmp.eq.s32.totalorder %s29, 1
      %p80 = por %p78, %p79
      %p81 = scmp.ne.s32.totalorder %s72, %s73
      %p82 = scmp.eq.s32.totalorder %s29, 0
      %p83 = por %p81, %p82
      %p84 = scmp.ne.s32.totalorder %s72, %s73
      %p85 = scmp.eq.s32.totalorder %s30, 1
      %p86 = por %p84, %p85
      %p88 = scmp.ne.s32.totalorder %s73, %s87
      %p89 = scmp.eq.s32.totalorder %s30, 0
      %p90 = por %p88, %p89
      %s92 = sadd.s32 %s91, 1
      %p95 = scmp.eq.s32.totalorder %s24, 1
      %p96 = scmp.ne.s32.totalorder %s91, %s93
      %p97 = scmp.eq.s32.totalorder %s24, 0
      %p98 = por %p96, %p97
      %p99 = scmp.ne.s32.totalorder %s91, %s93
      %p100 = scmp.eq.s32.totalorder %s29, 1
      %p101 = por %p99, %p100
      %p102 = scmp.ne.s32.totalorder %s93, %s94
      %p103 = scmp.eq.s32.totalorder %s29, 0
      %p104 = por %p102, %p103
      %p105 = scmp.ne.s32.totalorder %s93, %s94
      %p106 = scmp.eq.s32.totalorder %s30, 1
      %p107 = por %p105, %p106
      %p109 = scmp.ne.s32.totalorder %s94, %s108
      %p110 = scmp.eq.s32.totalorder %s30, 0
      %p111 = por %p109, %p110
      %s113 = sadd.s32 %s112, 1
      %p116 = scmp.eq.s32.totalorder %s24, 1
      %p117 = scmp.ne.s32.totalorder %s112, %s114
      %p118 = scmp.eq.s32.totalorder %s24, 0
      %p119 = por %p117, %p118
      %p120 = scmp.ne.s32.totalorder %s112, %s114
      %p121 = scmp.eq.s32.totalorder %s29, 1
      %p122 = por %p120, %p121
      %p123 = scmp.ne.s32.totalorder %s114, %s115
      %p124 = scmp.eq.s32.totalorder %s29, 0
      %p125 = por %p123, %p124
      %p126 = scmp.ne.s32.totalorder %s114, %s115
      %p127 = scmp.eq.s32.totalorder %s30, 1
      %p128 = por %p126, %p127
      %p130 = scmp.ne.s32.totalorder %s115, %s129
      %p131 = scmp.eq.s32.totalorder %s30, 0
      %p132 = por %p130, %p131
      %s134 = sadd.s32 %s133, 1
      %p137 = scmp.eq.s32.totalorder %s24, 1
      %p138 = scmp.ne.s32.totalorder %s133, %s135
      %p139 = scmp.eq.s32.totalorder %s24, 0
      %p140 = por %p138, %p139
      %p141 = scmp.ne.s32.totalorder %s133, %s135
      %p142 = scmp.eq.s32.totalorder %s29, 1
      %p143 = por %p141, %p142
      %p144 = scmp.ne.s32.totalorder %s135, %s136
      %p145 = scmp.eq.s32.totalorder %s29, 0
      %p146 = por %p144, %p145
      %p147 = scmp.ne.s32.totalorder %s135, %s136
      %p148 = scmp.eq.s32.totalorder %s30, 1
      %p149 = por %p147, %p148
      %p151 = scmp.ne.s32.totalorder %s136, %s150
      %p152 = scmp.eq.s32.totalorder %s30, 0
      %p153 = por %p151, %p152
      %s154 = ssub.s32 %s31, %s43
      %s155 = ssub.s32 %s32, %s39
      %s156 = sor.u32 %s154, %s155
      %p157 = scmp.eq.s32.totalorder %s156, 0
      %s159 = sadd.s32 %s158, 1
      %s160 = scalar_select %p157, %s158, %s159
      %p163 = pneg %p157
      %p164 = scmp.eq.s32.totalorder %s24, 1
      %p165 = por %p163, %p164
      %p166 = scmp.ne.s32.totalorder %s158, %s161
      %p167 = scmp.eq.s32.totalorder %s24, 0
      %p168 = por %p166, %p167
      %p169 = scmp.ne.s32.totalorder %s158, %s161
      %p170 = scmp.eq.s32.totalorder %s29, 1
      %p171 = por %p169, %p170
      %p172 = scmp.ne.s32.totalorder %s161, %s162
      %p173 = scmp.eq.s32.totalorder %s29, 0
      %p174 = por %p172, %p173
      %p175 = scmp.ne.s32.totalorder %s161, %s162
      %p176 = scmp.eq.s32.totalorder %s30, 1
      %p177 = por %p175, %p176
      %p179 = scmp.ne.s32.totalorder %s162, %s178
      %p180 = scmp.eq.s32.totalorder %s30, 0
      %p181 = por %p179, %p180
      %s182 = ssub.s32 %s31, %s43
      %s183 = ssub.s32 %s32, %s39
      %s184 = sor.u32 %s182, %s183
      %p185 = scmp.eq.s32.totalorder %s184, 0
      %s187 = sadd.s32 %s186, 1
      %s188 = scalar_select %p185, %s186, %s187
      %p191 = pneg %p185
      %p192 = scmp.eq.s32.totalorder %s24, 1
      %p193 = por %p191, %p192
      %p194 = scmp.ne.s32.totalorder %s186, %s189
      %p195 = scmp.eq.s32.totalorder %s24, 0
      %p196 = por %p194, %p195
      %p197 = scmp.ne.s32.totalorder %s186, %s189
      %p198 = scmp.eq.s32.totalorder %s29, 1
      %p199 = por %p197, %p198
      %p200 = scmp.ne.s32.totalorder %s189, %s190
      %p201 = scmp.eq.s32.totalorder %s29, 0
      %p202 = por %p200, %p201
      %p203 = scmp.ne.s32.totalorder %s189, %s190
      %p204 = scmp.eq.s32.totalorder %s30, 1
      %p205 = por %p203, %p204
      %p207 = scmp.ne.s32.totalorder %s190, %s206
      %p208 = scmp.eq.s32.totalorder %s30, 0
      %p209 = por %p207, %p208
      %p210 = scmp.le.s32.totalorder 1, %s24
      %p211 = scmp.lt.s32.totalorder %s24, 3
      %p212 = pnand %p210, %p211
      %p213 = pneg %p212
      // Predicated region
      $region9: #{tpu_custom_call.1} parent=5 // pred_check
        _
      $region10: #{tpu_custom_call.1} parent=5 // pred_check_branch
        %215 = sbr.rel (%p212) target = $region12
      $region11: #{tpu_custom_call.1} parent=5 // pred_region
        %s216 = ssub.s32 %s24, 1
        // Predicated region
        $region13: #{tpu_custom_call.1} parent=11 // pred_check
          %p217 = pneg %p83
        $region14: #{tpu_custom_call.1} parent=11 // pred_check_branch
          %219 = sbr.rel (%p217) target = $region16
        $region15: #{tpu_custom_call.1} parent=11 // pred_region
          %s221 = ssub.s32 512, 512
          %222 = vsyncadd [#allocation9], %s221
          %s223 = sshll.u32 [#allocation8], 4
          %s224 = int_to_ptr.vmem [resolvable:$true] %s223
          %229 = dma.hbm_to_vmem [thread:$0]  %s1, 512, %s224, [#allocation9], 128, 128, 8
        $region16: #{tpu_custom_call.1} parent=11 // pred_fallthru
          _
        // Predicated region
        $region17: #{tpu_custom_call.1} parent=11 // pred_check
          %p230 = pneg %p104
        $region18: #{tpu_custom_call.1} parent=11 // pred_check_branch
          %232 = sbr.rel (%p230) target = $region20
        $region19: #{tpu_custom_call.1} parent=11 // pred_region
          %s234 = ssub.s32 512, 512
          %235 = vsyncadd [#allocation9], %s234
          %s236 = sshll.u32 [#allocation10], 4
          %s237 = int_to_ptr.vmem [resolvable:$true] %s236
          %242 = dma.hbm_to_vmem [thread:$0]  %s2, 512, %s237, [#allocation9], 128, 128, 8
        $region20: #{tpu_custom_call.1} parent=11 // pred_fallthru
          _
        // Predicated region
        $region21: #{tpu_custom_call.1} parent=11 // pred_check
          %p243 = pneg %p125
        $region22: #{tpu_custom_call.1} parent=11 // pred_check_branch
          %245 = sbr.rel (%p243) target = $region24
        $region23: #{tpu_custom_call.1} parent=11 // pred_region
          %s247 = ssub.s32 512, 512
          %248 = vsyncadd [#allocation12], %s247
          %s249 = sshll.u32 [#allocation11], 4
          %s250 = int_to_ptr.vmem [resolvable:$true] %s249
          %255 = dma.hbm_to_vmem [thread:$0]  %s3, 512, %s250, [#allocation12], 128, 128, 8
        $region24: #{tpu_custom_call.1} parent=11 // pred_fallthru
          _
        // Predicated region
        $region25: #{tpu_custom_call.1} parent=11 // pred_check
          %p256 = pneg %p146
        $region26: #{tpu_custom_call.1} parent=11 // pred_check_branch
          %258 = sbr.rel (%p256) target = $region28
        $region27: #{tpu_custom_call.1} parent=11 // pred_region
          %s260 = ssub.s32 16, 16
          %261 = vsyncadd [#allocation12], %s260
          %s263 = sshll.u32 [#allocation13], 4
          %s264 = int_to_ptr.vmem [resolvable:$true] %s263
          %266 = dma.hbm_to_vmem [thread:$0]  %s4, 16, %s264, [#allocation12]
        $region28: #{tpu_custom_call.1} parent=11 // pred_fallthru
          _
      $region12: #{tpu_custom_call.1} parent=5 // pred_fallthru
        _
      %p267 = scmp.lt.s32.totalorder %s24, 2
      // Predicated region
      $region29: #{tpu_custom_call.1} parent=5 // pred_check
        %p268 = pneg %p267
      $region30: #{tpu_custom_call.1} parent=5 // pred_check_branch
        %270 = sbr.rel (%p268) target = $region32
      $region31: #{tpu_custom_call.1} parent=5 // pred_region
        // Predicated region
        $region33: #{tpu_custom_call.1} parent=31 // pred_check
          %p271 = pneg %p56
        $region34: #{tpu_custom_call.1} parent=31 // pred_check_branch
          %273 = sbr.rel (%p271) target = $region36
        $region35: #{tpu_custom_call.1} parent=31 // pred_region
          %s274 = sand.u32 %s46, 1
          %s275 = scalar_lea.sflag [#allocation6], %s274
          %s276 = sand.u32 %s46, 1
          %s277 = smul.addr %s276, 8
          %s278 = scalar_lea.vmem [#allocation5], %s277
          %s280 = ssub.s32 128, 128
          %281 = vsyncadd %s275, %s280
          %s282 = smul.addr %s31, 128
          %s283 = scalar_lea.hbm %s0, %s282
          %s285 = sshll.u32 %s278, 4
          %s286 = int_to_ptr.vmem [resolvable:$true] %s285
          %288 = dma.hbm_to_vmem [thread:$0]  %s283, 128, %s286, %s275
        $region36: #{tpu_custom_call.1} parent=31 // pred_fallthru
          _
      $region32: #{tpu_custom_call.1} parent=5 // pred_fallthru
        _
      %p289 = scmp.le.s32.totalorder 1, %s24
      %p290 = scmp.lt.s32.totalorder %s24, 3
      %p291 = pnand %p289, %p290
      %p292 = pneg %p291
      // Predicated region
      $region37: #{tpu_custom_call.1} parent=5 // pred_check
        _
      $region38: #{tpu_custom_call.1} parent=5 // pred_check_branch
        %294 = sbr.rel (%p291) target = $region40
      $region39: #{tpu_custom_call.1} parent=5 // pred_region
        %s295 = ssub.s32 %s24, 1
        %s296 = sand.u32 %s49, 1
        %s297 = scalar_lea.sflag [#allocation6], %s296
        %s298 = sand.u32 %s49, 1
        %s299 = smul.addr %s298, 8
        %s300 = scalar_lea.vmem [#allocation5], %s299
        // Predicated region
        $region41: #{tpu_custom_call.1} parent=39 // pred_check
          %p301 = pneg %p62
        $region42: #{tpu_custom_call.1} parent=39 // pred_check_branch
          %303 = sbr.rel (%p301) target = $region44
        $region43: #{tpu_custom_call.1} parent=39 // pred_region
          %304 = dma.done %s297, 128
        $region44: #{tpu_custom_call.1} parent=39 // pred_fallthru
          _
        // Predicated region
        $region45: #{tpu_custom_call.1} parent=39 // pred_check
          %p305 = pneg %p83
        $region46: #{tpu_custom_call.1} parent=39 // pred_check_branch
          %307 = sbr.rel (%p305) target = $region48
        $region47: #{tpu_custom_call.1} parent=39 // pred_region
          %308 = dma.done [#allocation9], 512
        $region48: #{tpu_custom_call.1} parent=39 // pred_fallthru
          _
        // Predicated region
        $region49: #{tpu_custom_call.1} parent=39 // pred_check
          %p309 = pneg %p104
        $region50: #{tpu_custom_call.1} parent=39 // pred_check_branch
          %311 = sbr.rel (%p309) target = $region52
        $region51: #{tpu_custom_call.1} parent=39 // pred_region
          %312 = dma.done [#allocation9], 512
        $region52: #{tpu_custom_call.1} parent=39 // pred_fallthru
          _
        // Predicated region
        $region53: #{tpu_custom_call.1} parent=39 // pred_check
          %p313 = pneg %p125
        $region54: #{tpu_custom_call.1} parent=39 // pred_check_branch
          %315 = sbr.rel (%p313) target = $region56
        $region55: #{tpu_custom_call.1} parent=39 // pred_region
          %316 = dma.done [#allocation12], 512
        $region56: #{tpu_custom_call.1} parent=39 // pred_fallthru
          _
        // Predicated region
        $region57: #{tpu_custom_call.1} parent=39 // pred_check
          %p317 = pneg %p146
        $region58: #{tpu_custom_call.1} parent=39 // pred_check_branch
          %319 = sbr.rel (%p317) target = $region60
        $region59: #{tpu_custom_call.1} parent=39 // pred_region
          %320 = dma.done [#allocation12], 16
        $region60: #{tpu_custom_call.1} parent=39 // pred_fallthru
          _
        %s321 = sand.u32 %s49, 1
        %s322 = scalar_lea.sflag [#allocation6], %s321
        %s323 = sand.u32 %s49, 1
        %s324 = smul.addr %s323, 8
        %s325 = scalar_lea.vmem [#allocation5], %s324
        %p326 = pneg %p62
        %p327 = pneg %p59
        %p328 = pneg %p83
        %p329 = pneg %p80
        %p330 = pneg %p104
        %p331 = pneg %p101
        %p332 = pneg %p125
        %p333 = pneg %p122
        %p334 = pneg %p146
        %p335 = pneg %p143
        %p336 = pneg %p174
        %p337 = pneg %p171
        %s338 = sand.u32 %s161, 1
        %s339 = scalar_lea.sflag [#allocation7], %s338
        %s340 = sand.u32 %s161, 1
        %s341 = smul.addr %s340, 8
        %s342 = scalar_lea.vmem [#allocation14], %s341
        %p343 = pneg %p202
        %p344 = pneg %p199
        %s345 = sand.u32 %s189, 1
        %s346 = scalar_lea.sflag [#allocation16], %s345
        %s347 = sand.u32 %s189, 1
        %s348 = smul.addr %s347, 32
        %s349 = scalar_lea.vmem [#allocation15], %s348
        %p350 = scmp.eq.s32.totalorder %s34, 0
        // Predicated region
        $region61: #{tpu_custom_call.1} parent=39 // pred_check
          %p351 = pneg %p350
        $region62: #{tpu_custom_call.1} parent=39 // pred_check_branch
          %353 = sbr.rel (%p351) target = $region64
        $region63: #{tpu_custom_call.1} parent=39 // pred_region
          %v354 = vld [vmem:[%s300] sm:$0xff]
          %v355 = vld [vmem:[#allocation10] sm:$0xff]
          %v356 = vld [vmem:[#allocation10 + $0x8] sm:$0xff]
          %v357 = vld [vmem:[#allocation10 + $0x10] sm:$0xff]
          %v358 = vld [vmem:[#allocation10 + $0x18] sm:$0xff]
          %vm359 = vcmask 261120
          %v361 = vsel %vm359, %v354, 0
          %363 = vmatprep.subr.mxu0 0.0
          %364 = vmatpush1.msra.mxu0 %v355
          %365 = vmatprep.subr.mxu0 0.0
          %366 = vmatpush1.msra.mxu0 %v356
          %367 = vmatprep.subr.mxu0 0.0
          %368 = vmatpush1.msra.mxu0 %v357
          %369 = vmatprep.subr.mxu0 0.0
          %370 = vmatpush1.msra.mxu0 %v358
          %371 = vmatprep.subr.mxu0 0.0
          %372 = vmatpush1.msra.mxu0 0.0
          %373 = vmatprep.subr.mxu0 0.0
          %374 = vmatpush1.msra.mxu0 0.0
          %375 = vmatprep.subr.mxu0 0.0
          %376 = vmatpush1.msra.mxu0 0.0
          %377 = vmatprep.subr.mxu0 0.0
          %378 = vmatpush1.msra.mxu0 0.0
          %379 = vmatprep.subr.mxu0 0.0
          %380 = vmatpush1.msra.mxu0 0.0
          %381 = vmatprep.subr.mxu0 0.0
          %382 = vmatpush1.msra.mxu0 0.0
          %383 = vmatprep.subr.mxu0 0.0
          %384 = vmatpush1.msra.mxu0 0.0
          %385 = vmatprep.subr.mxu0 0.0
          %386 = vmatpush1.msra.mxu0 0.0
          %387 = vmatprep.subr.mxu0 0.0
          %388 = vmatpush1.msra.mxu0 0.0
          %389 = vmatprep.subr.mxu0 0.0
          %390 = vmatpush1.msra.mxu0 0.0
          %391 = vmatprep.subr.mxu0 0.0
          %392 = vmatpush1.msra.mxu0 0.0
          %393 = vmatprep.subr.mxu0 0.0
          %394 = vmatpush1.msra.mxu0 0.0
          %395 = vmatprep.subr.mxu0 0.0
          %396 = vmatpush1.msra.mxu0 0.0
          %397 = vmatprep.subr.mxu0 0.0
          %398 = vmatpush1.msra.mxu0 0.0
          %399 = vmatprep.subr.mxu0 0.0
          %400 = vmatpush1.msra.mxu0 0.0
          %401 = vmatprep.subr.mxu0 0.0
          %402 = vmatpush1.msra.mxu0 0.0
          %403 = vmatprep.subr.mxu0 0.0
          %404 = vmatpush1.msra.mxu0 0.0
          %405 = vmatprep.subr.mxu0 0.0
          %406 = vmatpush1.msra.mxu0 0.0
          %407 = vmatprep.subr.mxu0 0.0
          %408 = vmatpush1.msra.mxu0 0.0
          %409 = vmatprep.subr.mxu0 0.0
          %410 = vmatpush1.msra.mxu0 0.0
          %411 = vmatprep.subr.mxu0 0.0
          %412 = vmatpush1.msra.mxu0 0.0
          %413 = vmatprep.subr.mxu0 0.0
          %414 = vmatpush1.msra.mxu0 0.0
          %415 = vmatprep.subr.mxu0 0.0
          %416 = vmatpush1.msra.mxu0 0.0
          %417 = vmatprep.subr.mxu0 0.0
          %418 = vmatpush1.msra.mxu0 0.0
          %419 = vmatprep.subr.mxu0 0.0
          %420 = vmatpush1.msra.mxu0 0.0
          %421 = vmatprep.subr.mxu0 0.0
          %422 = vmatpush1.msra.mxu0 0.0
          %423 = vmatprep.subr.mxu0 0.0
          %424 = vmatpush1.msra.mxu0 0.0
          %425 = vmatprep.subr.mxu0 0.0
          %426 = vmatpush1.msra.mxu0 0.0
          %427 = vmatprep.mubr.f32.mxu0 0.0
          %428 = vmatmul.mubr.f32.gmra.mrb[0].mxu0 %v361
          %v429 = vpop.f32.mrb[0].mxu0
          %v430 = vadd.f32 0.0, %v429
          %v431 = vpop.f32.mrb[0].mxu0
          %432 = vdwg.mxu0
          %vm433 = vcmask 523264
          %434 = vst.msk [vmem:[#allocation2] sm:$0xff] %vm433, %v430
        $region64: #{tpu_custom_call.1} parent=39 // pred_fallthru
          _
        %s435 = smul.u32 %s34, 8
        %s436 = scalar_lea.vmem %s300, %s435 [#allocation5]
        %v437 = vld [vmem:[%s436] sm:$0xff]
        %v438 = vld [vmem:[#allocation8] sm:$0xff]
        %v439 = vld [vmem:[#allocation8 + $0x8] sm:$0xff]
        %v440 = vld [vmem:[#allocation8 + $0x10] sm:$0xff]
        %v441 = vld [vmem:[#allocation8 + $0x18] sm:$0xff]
        %vm442 = vcmask 261120
        %v444 = vsel %vm442, %v437, 0
        %446 = vmatprep.subr.mxu0 0.0
        %447 = vmatpush1.msra.mxu0 %v438
        %448 = vmatprep.subr.mxu0 0.0
        %449 = vmatpush1.msra.mxu0 %v439
        %450 = vmatprep.subr.mxu0 0.0
        %451 = vmatpush1.msra.mxu0 %v440
        %452 = vmatprep.subr.mxu0 0.0
        %453 = vmatpush1.msra.mxu0 %v441
        %454 = vmatprep.subr.mxu0 0.0
        %455 = vmatpush1.msra.mxu0 0.0
        %456 = vmatprep.subr.mxu0 0.0
        %457 = vmatpush1.msra.mxu0 0.0
        %458 = vmatprep.subr.mxu0 0.0
        %459 = vmatpush1.msra.mxu0 0.0
        %460 = vmatprep.subr.mxu0 0.0
        %461 = vmatpush1.msra.mxu0 0.0
        %462 = vmatprep.subr.mxu0 0.0
        %463 = vmatpush1.msra.mxu0 0.0
        %464 = vmatprep.subr.mxu0 0.0
        %465 = vmatpush1.msra.mxu0 0.0
        %466 = vmatprep.subr.mxu0 0.0
        %467 = vmatpush1.msra.mxu0 0.0
        %468 = vmatprep.subr.mxu0 0.0
        %469 = vmatpush1.msra.mxu0 0.0
        %470 = vmatprep.subr.mxu0 0.0
        %471 = vmatpush1.msra.mxu0 0.0
        %472 = vmatprep.subr.mxu0 0.0
        %473 = vmatpush1.msra.mxu0 0.0
        %474 = vmatprep.subr.mxu0 0.0
        %475 = vmatpush1.msra.mxu0 0.0
        %476 = vmatprep.subr.mxu0 0.0
        %477 = vmatpush1.msra.mxu0 0.0
        %478 = vmatprep.subr.mxu0 0.0
        %479 = vmatpush1.msra.mxu0 0.0
        %480 = vmatprep.subr.mxu0 0.0
        %481 = vmatpush1.msra.mxu0 0.0
        %482 = vmatprep.subr.mxu0 0.0
        %483 = vmatpush1.msra.mxu0 0.0
        %484 = vmatprep.subr.mxu0 0.0
        %485 = vmatpush1.msra.mxu0 0.0
        %486 = vmatprep.subr.mxu0 0.0
        %487 = vmatpush1.msra.mxu0 0.0
        %488 = vmatprep.subr.mxu0 0.0
        %489 = vmatpush1.msra.mxu0 0.0
        %490 = vmatprep.subr.mxu0 0.0
        %491 = vmatpush1.msra.mxu0 0.0
        %492 = vmatprep.subr.mxu0 0.0
        %493 = vmatpush1.msra.mxu0 0.0
        %494 = vmatprep.subr.mxu0 0.0
        %495 = vmatpush1.msra.mxu0 0.0
        %496 = vmatprep.subr.mxu0 0.0
        %497 = vmatpush1.msra.mxu0 0.0
        %498 = vmatprep.subr.mxu0 0.0
        %499 = vmatpush1.msra.mxu0 0.0
        %500 = vmatprep.subr.mxu0 0.0
        %501 = vmatpush1.msra.mxu0 0.0
        %502 = vmatprep.subr.mxu0 0.0
        %503 = vmatpush1.msra.mxu0 0.0
        %504 = vmatprep.subr.mxu0 0.0
        %505 = vmatpush1.msra.mxu0 0.0
        %506 = vmatprep.subr.mxu0 0.0
        %507 = vmatpush1.msra.mxu0 0.0
        %508 = vmatprep.subr.mxu0 0.0
        %509 = vmatpush1.msra.mxu0 0.0
        %510 = vmatprep.mubr.f32.mxu0 0.0
        %511 = vmatmul.mubr.f32.gmra.mrb[0].mxu0 %v444
        %v512 = vpop.f32.mrb[0].mxu0
        %v513 = vadd.f32 0.0, %v512
        %v514 = vpop.f32.mrb[0].mxu0
        %515 = vdwg.mxu0
        %516 = vst.msk [vmem:[#allocation3] sm:$0xff] %vm442, %v513
        %v517 = vld [vmem:[#allocation3] sm:$0xff]
        %v518 = vld [vmem:[#allocation2] sm:$0xff]
        %vm519 = vcmask 64512
        %v521 = vsel %vm519, %v517, 0
        %v524 = vsel %vm519, %v518, 0
        %526 = vmatprep.subr.mxu0 0.0
        %527 = vmatpush1.xpose.msra.mxu0 %v524
        %528 = vmatprep.subr.mxu0 0.0
        %529 = vmatpush1.xpose.msra.mxu0 0.0
        %530 = vmatprep.subr.mxu0 0.0
        %531 = vmatpush1.xpose.msra.mxu0 0.0
        %532 = vmatprep.subr.mxu0 0.0
        %533 = vmatpush1.xpose.msra.mxu0 0.0
        %534 = vmatprep.subr.mxu0 0.0
        %535 = vmatpush1.xpose.msra.mxu0 0.0
        %536 = vmatprep.subr.mxu0 0.0
        %537 = vmatpush1.xpose.msra.mxu0 0.0
        %538 = vmatprep.subr.mxu0 0.0
        %539 = vmatpush1.xpose.msra.mxu0 0.0
        %540 = vmatprep.subr.mxu0 0.0
        %541 = vmatpush1.xpose.msra.mxu0 0.0
        %542 = vmatprep.subr.mxu0 0.0
        %543 = vmatpush1.xpose.msra.mxu0 0.0
        %544 = vmatprep.subr.mxu0 0.0
        %545 = vmatpush1.xpose.msra.mxu0 0.0
        %546 = vmatprep.subr.mxu0 0.0
        %547 = vmatpush1.xpose.msra.mxu0 0.0
        %548 = vmatprep.subr.mxu0 0.0
        %549 = vmatpush1.xpose.msra.mxu0 0.0
        %550 = vmatprep.subr.mxu0 0.0
        %551 = vmatpush1.xpose.msra.mxu0 0.0
        %552 = vmatprep.subr.mxu0 0.0
        %553 = vmatpush1.xpose.msra.mxu0 0.0
        %554 = vmatprep.subr.mxu0 0.0
        %555 = vmatpush1.xpose.msra.mxu0 0.0
        %556 = vmatprep.subr.mxu0 0.0
        %557 = vmatpush1.xpose.msra.mxu0 0.0
        %558 = vmatprep.subr.mxu0 0.0
        %559 = vmatpush1.xpose.msra.mxu0 0.0
        %560 = vmatprep.subr.mxu0 0.0
        %561 = vmatpush1.xpose.msra.mxu0 0.0
        %562 = vmatprep.subr.mxu0 0.0
        %563 = vmatpush1.xpose.msra.mxu0 0.0
        %564 = vmatprep.subr.mxu0 0.0
        %565 = vmatpush1.xpose.msra.mxu0 0.0
        %566 = vmatprep.subr.mxu0 0.0
        %567 = vmatpush1.xpose.msra.mxu0 0.0
        %568 = vmatprep.subr.mxu0 0.0
        %569 = vmatpush1.xpose.msra.mxu0 0.0
        %570 = vmatprep.subr.mxu0 0.0
        %571 = vmatpush1.xpose.msra.mxu0 0.0
        %572 = vmatprep.subr.mxu0 0.0
        %573 = vmatpush1.xpose.msra.mxu0 0.0
        %574 = vmatprep.subr.mxu0 0.0
        %575 = vmatpush1.xpose.msra.mxu0 0.0
        %576 = vmatprep.subr.mxu0 0.0
        %577 = vmatpush1.xpose.msra.mxu0 0.0
        %578 = vmatprep.subr.mxu0 0.0
        %579 = vmatpush1.xpose.msra.mxu0 0.0
        %580 = vmatprep.subr.mxu0 0.0
        %581 = vmatpush1.xpose.msra.mxu0 0.0
        %582 = vmatprep.subr.mxu0 0.0
        %583 = vmatpush1.xpose.msra.mxu0 0.0
        %584 = vmatprep.subr.mxu0 0.0
        %585 = vmatpush1.xpose.msra.mxu0 0.0
        %586 = vmatprep.subr.mxu0 0.0
        %587 = vmatpush1.xpose.msra.mxu0 0.0
        %588 = vmatprep.subr.mxu0 0.0
        %589 = vmatpush1.xpose.msra.mxu0 0.0
        %590 = vmatprep.mubr.f32.mxu0 0.0
        %591 = vmatmul.mubr.f32.gmra.mrb[0].mxu0 %v521
        %v592 = vpop.f32.mrb[0].mxu0
        %v593 = vadd.f32 0.0, %v592
        %v594 = vpop.f32.mrb[0].mxu0
        %595 = vdwg.mxu0
        %v596 = vsel %vm519, %v593, -inf
        %597 = vmax.xlane.f32.xlu0 %v596
        %v598 = vpop.xlane.xlu0 %597
        %v599 = vsub.f32 %v593, %v598
        %v600 = vmul.f32 %v599, 1.442695
        %v601 = vpow.pop %v600
        %v602 = vsel %vm519, %v601, 0.0
        %603 = vadd.xlane.f32.xlu0 %v602
        %v604 = vpop.xlane.xlu0 %603
        %v605 = vrcp.pop %v604
        %v606 = vmul.f32 %v601, %v605
        %607 = vst.msk [vmem:[%s349] sm:$0xff] %vm519, %v606
        %608 = vrot.lane.b32.xlu0 %v518, 96
        %v609 = vpop.permute.xlu0 %608
        %v612 = vsel %vm519, %v606, 0
        %614 = vmatprep.subr.mxu0 0.0
        %615 = vmatpush1.msra.mxu0 %v609
        %616 = vmatprep.subr.mxu0 0.0
        %617 = vmatpush1.msra.mxu0 0.0
        %618 = vmatprep.subr.mxu0 0.0
        %619 = vmatpush1.msra.mxu0 0.0
        %620 = vmatprep.subr.mxu0 0.0
        %621 = vmatpush1.msra.mxu0 0.0
        %622 = vmatprep.subr.mxu0 0.0
        %623 = vmatpush1.msra.mxu0 0.0
        %624 = vmatprep.subr.mxu0 0.0
        %625 = vmatpush1.msra.mxu0 0.0
        %626 = vmatprep.subr.mxu0 0.0
        %627 = vmatpush1.msra.mxu0 0.0
        %628 = vmatprep.subr.mxu0 0.0
        %629 = vmatpush1.msra.mxu0 0.0
        %630 = vmatprep.subr.mxu0 0.0
        %631 = vmatpush1.msra.mxu0 0.0
        %632 = vmatprep.subr.mxu0 0.0
        %633 = vmatpush1.msra.mxu0 0.0
        %634 = vmatprep.subr.mxu0 0.0
        %635 = vmatpush1.msra.mxu0 0.0
        %636 = vmatprep.subr.mxu0 0.0
        %637 = vmatpush1.msra.mxu0 0.0
        %638 = vmatprep.subr.mxu0 0.0
        %639 = vmatpush1.msra.mxu0 0.0
        %640 = vmatprep.subr.mxu0 0.0
        %641 = vmatpush1.msra.mxu0 0.0
        %642 = vmatprep.subr.mxu0 0.0
        %643 = vmatpush1.msra.mxu0 0.0
        %644 = vmatprep.subr.mxu0 0.0
        %645 = vmatpush1.msra.mxu0 0.0
        %646 = vmatprep.subr.mxu0 0.0
        %647 = vmatpush1.msra.mxu0 0.0
        %648 = vmatprep.subr.mxu0 0.0
        %649 = vmatpush1.msra.mxu0 0.0
        %650 = vmatprep.subr.mxu0 0.0
        %651 = vmatpush1.msra.mxu0 0.0
        %652 = vmatprep.subr.mxu0 0.0
        %653 = vmatpush1.msra.mxu0 0.0
        %654 = vmatprep.subr.mxu0 0.0
        %655 = vmatpush1.msra.mxu0 0.0
        %656 = vmatprep.subr.mxu0 0.0
        %657 = vmatpush1.msra.mxu0 0.0
        %658 = vmatprep.subr.mxu0 0.0
        %659 = vmatpush1.msra.mxu0 0.0
        %660 = vmatprep.subr.mxu0 0.0
        %661 = vmatpush1.msra.mxu0 0.0
        %662 = vmatprep.subr.mxu0 0.0
        %663 = vmatpush1.msra.mxu0 0.0
        %664 = vmatprep.subr.mxu0 0.0
        %665 = vmatpush1.msra.mxu0 0.0
        %666 = vmatprep.subr.mxu0 0.0
        %667 = vmatpush1.msra.mxu0 0.0
        %668 = vmatprep.subr.mxu0 0.0
        %669 = vmatpush1.msra.mxu0 0.0
        %670 = vmatprep.subr.mxu0 0.0
        %671 = vmatpush1.msra.mxu0 0.0
        %672 = vmatprep.subr.mxu0 0.0
        %673 = vmatpush1.msra.mxu0 0.0
        %674 = vmatprep.subr.mxu0 0.0
        %675 = vmatpush1.msra.mxu0 0.0
        %676 = vmatprep.subr.mxu0 0.0
        %677 = vmatpush1.msra.mxu0 0.0
        %678 = vmatprep.mubr.f32.mxu0 0.0
        %679 = vmatmul.mubr.f32.gmra.mrb[0].mxu0 %v612
        %v680 = vpop.f32.mrb[0].mxu0
        %v681 = vadd.f32 0.0, %v680
        %v682 = vpop.f32.mrb[0].mxu0
        %683 = vdwg.mxu0
        %684 = vst.msk [vmem:[#allocation4] sm:$0xff] %vm519, %v681
        %v685 = vld [vmem:[#allocation3] sm:$0xff]
        %v686 = vld [vmem:[#allocation2] sm:$0xff]
        %688 = vrot.lane.b32.xlu0 %v685, 120
        %v689 = vpop.permute.xlu0 %688
        %691 = vrot.lane.b32.xlu0 %v686, 120
        %v692 = vpop.permute.xlu0 %691
        %v693 = vsel %vm519, %v689, 0
        %v695 = vsel %vm519, %v692, 0
        %697 = vmatprep.subr.mxu0 0.0
        %698 = vmatpush1.xpose.msra.mxu0 %v695
        %699 = vmatprep.subr.mxu0 0.0
        %700 = vmatpush1.xpose.msra.mxu0 0.0
        %701 = vmatprep.subr.mxu0 0.0
        %702 = vmatpush1.xpose.msra.mxu0 0.0
        %703 = vmatprep.subr.mxu0 0.0
        %704 = vmatpush1.xpose.msra.mxu0 0.0
        %705 = vmatprep.subr.mxu0 0.0
        %706 = vmatpush1.xpose.msra.mxu0 0.0
        %707 = vmatprep.subr.mxu0 0.0
        %708 = vmatpush1.xpose.msra.mxu0 0.0
        %709 = vmatprep.subr.mxu0 0.0
        %710 = vmatpush1.xpose.msra.mxu0 0.0
        %711 = vmatprep.subr.mxu0 0.0
        %712 = vmatpush1.xpose.msra.mxu0 0.0
        %713 = vmatprep.subr.mxu0 0.0
        %714 = vmatpush1.xpose.msra.mxu0 0.0
        %715 = vmatprep.subr.mxu0 0.0
        %716 = vmatpush1.xpose.msra.mxu0 0.0
        %717 = vmatprep.subr.mxu0 0.0
        %718 = vmatpush1.xpose.msra.mxu0 0.0
        %719 = vmatprep.subr.mxu0 0.0
        %720 = vmatpush1.xpose.msra.mxu0 0.0
        %721 = vmatprep.subr.mxu0 0.0
        %722 = vmatpush1.xpose.msra.mxu0 0.0
        %723 = vmatprep.subr.mxu0 0.0
        %724 = vmatpush1.xpose.msra.mxu0 0.0
        %725 = vmatprep.subr.mxu0 0.0
        %726 = vmatpush1.xpose.msra.mxu0 0.0
        %727 = vmatprep.subr.mxu0 0.0
        %728 = vmatpush1.xpose.msra.mxu0 0.0
        %729 = vmatprep.subr.mxu0 0.0
        %730 = vmatpush1.xpose.msra.mxu0 0.0
        %731 = vmatprep.subr.mxu0 0.0
        %732 = vmatpush1.xpose.msra.mxu0 0.0
        %733 = vmatprep.subr.mxu0 0.0
        %734 = vmatpush1.xpose.msra.mxu0 0.0
        %735 = vmatprep.subr.mxu0 0.0
        %736 = vmatpush1.xpose.msra.mxu0 0.0
        %737 = vmatprep.subr.mxu0 0.0
        %738 = vmatpush1.xpose.msra.mxu0 0.0
        %739 = vmatprep.subr.mxu0 0.0
        %740 = vmatpush1.xpose.msra.mxu0 0.0
        %741 = vmatprep.subr.mxu0 0.0
        %742 = vmatpush1.xpose.msra.mxu0 0.0
        %743 = vmatprep.subr.mxu0 0.0
        %744 = vmatpush1.xpose.msra.mxu0 0.0
        %745 = vmatprep.subr.mxu0 0.0
        %746 = vmatpush1.xpose.msra.mxu0 0.0
        %747 = vmatprep.subr.mxu0 0.0
        %748 = vmatpush1.xpose.msra.mxu0 0.0
        %749 = vmatprep.subr.mxu0 0.0
        %750 = vmatpush1.xpose.msra.mxu0 0.0
        %751 = vmatprep.subr.mxu0 0.0
        %752 = vmatpush1.xpose.msra.mxu0 0.0
        %753 = vmatprep.subr.mxu0 0.0
        %754 = vmatpush1.xpose.msra.mxu0 0.0
        %755 = vmatprep.subr.mxu0 0.0
        %756 = vmatpush1.xpose.msra.mxu0 0.0
        %757 = vmatprep.subr.mxu0 0.0
        %758 = vmatpush1.xpose.msra.mxu0 0.0
        %759 = vmatprep.subr.mxu0 0.0
        %760 = vmatpush1.xpose.msra.mxu0 0.0
        %761 = vmatprep.mubr.f32.mxu0 0.0
        %762 = vmatmul.mubr.f32.gmra.mrb[0].mxu0 %v693
        %v763 = vpop.f32.mrb[0].mxu0
        %v764 = vadd.f32 0.0, %v763
        %v765 = vpop.f32.mrb[0].mxu0
        %766 = vdwg.mxu0
        %v767 = vsel %vm519, %v764, -inf
        %768 = vmax.xlane.f32.xlu0 %v767
        %v769 = vpop.xlane.xlu0 %768
        %v770 = vsub.f32 %v764, %v769
        %v771 = vmul.f32 %v770, 1.442695
        %v772 = vpow.pop %v771
        %v773 = vsel %vm519, %v772, 0.0
        %774 = vadd.xlane.f32.xlu0 %v773
        %v775 = vpop.xlane.xlu0 %774
        %v776 = vrcp.pop %v775
        %v777 = vmul.f32 %v772, %v776
        %s778 = scalar_lea.vmem %s349, 8 [#allocation15]
        %779 = vst.msk [vmem:[%s778] sm:$0xff] %vm519, %v777
        %780 = vrot.lane.b32.xlu0 %v686, 88
        %v781 = vpop.permute.xlu0 %780
        %v784 = vsel %vm519, %v777, 0
        %786 = vmatprep.subr.mxu0 0.0
        %787 = vmatpush1.msra.mxu0 %v781
        %788 = vmatprep.subr.mxu0 0.0
        %789 = vmatpush1.msra.mxu0 0.0
        %790 = vmatprep.subr.mxu0 0.0
        %791 = vmatpush1.msra.mxu0 0.0
        %792 = vmatprep.subr.mxu0 0.0
        %793 = vmatpush1.msra.mxu0 0.0
        %794 = vmatprep.subr.mxu0 0.0
        %795 = vmatpush1.msra.mxu0 0.0
        %796 = vmatprep.subr.mxu0 0.0
        %797 = vmatpush1.msra.mxu0 0.0
        %798 = vmatprep.subr.mxu0 0.0
        %799 = vmatpush1.msra.mxu0 0.0
        %800 = vmatprep.subr.mxu0 0.0
        %801 = vmatpush1.msra.mxu0 0.0
        %802 = vmatprep.subr.mxu0 0.0
        %803 = vmatpush1.msra.mxu0 0.0
        %804 = vmatprep.subr.mxu0 0.0
        %805 = vmatpush1.msra.mxu0 0.0
        %806 = vmatprep.subr.mxu0 0.0
        %807 = vmatpush1.msra.mxu0 0.0
        %808 = vmatprep.subr.mxu0 0.0
        %809 = vmatpush1.msra.mxu0 0.0
        %810 = vmatprep.subr.mxu0 0.0
        %811 = vmatpush1.msra.mxu0 0.0
        %812 = vmatprep.subr.mxu0 0.0
        %813 = vmatpush1.msra.mxu0 0.0
        %814 = vmatprep.subr.mxu0 0.0
        %815 = vmatpush1.msra.mxu0 0.0
        %816 = vmatprep.subr.mxu0 0.0
        %817 = vmatpush1.msra.mxu0 0.0
        %818 = vmatprep.subr.mxu0 0.0
        %819 = vmatpush1.msra.mxu0 0.0
        %820 = vmatprep.subr.mxu0 0.0
        %821 = vmatpush1.msra.mxu0 0.0
        %822 = vmatprep.subr.mxu0 0.0
        %823 = vmatpush1.msra.mxu0 0.0
        %824 = vmatprep.subr.mxu0 0.0
        %825 = vmatpush1.msra.mxu0 0.0
        %826 = vmatprep.subr.mxu0 0.0
        %827 = vmatpush1.msra.mxu0 0.0
        %828 = vmatprep.subr.mxu0 0.0
        %829 = vmatpush1.msra.mxu0 0.0
        %830 = vmatprep.subr.mxu0 0.0
        %831 = vmatpush1.msra.mxu0 0.0
        %832 = vmatprep.subr.mxu0 0.0
        %833 = vmatpush1.msra.mxu0 0.0
        %834 = vmatprep.subr.mxu0 0.0
        %835 = vmatpush1.msra.mxu0 0.0
        %836 = vmatprep.subr.mxu0 0.0
        %837 = vmatpush1.msra.mxu0 0.0
        %838 = vmatprep.subr.mxu0 0.0
        %839 = vmatpush1.msra.mxu0 0.0
        %840 = vmatprep.subr.mxu0 0.0
        %841 = vmatpush1.msra.mxu0 0.0
        %842 = vmatprep.subr.mxu0 0.0
        %843 = vmatpush1.msra.mxu0 0.0
        %844 = vmatprep.subr.mxu0 0.0
        %845 = vmatpush1.msra.mxu0 0.0
        %846 = vmatprep.subr.mxu0 0.0
        %847 = vmatpush1.msra.mxu0 0.0
        %848 = vmatprep.subr.mxu0 0.0
        %849 = vmatpush1.msra.mxu0 0.0
        %850 = vmatprep.mubr.f32.mxu0 0.0
        %851 = vmatmul.mubr.f32.gmra.mrb[0].mxu0 %v784
        %v852 = vpop.f32.mrb[0].mxu0
        %v853 = vadd.f32 0.0, %v852
        %v854 = vpop.f32.mrb[0].mxu0
        %855 = vdwg.mxu0
        %857 = vrot.lane.b32.xlu0 %v853, 8
        %v858 = vpop.permute.xlu0 %857
        %vm860 = vcmask 130112
        %861 = vst.msk [vmem:[#allocation4] sm:$0xff] %vm860, %v858
        %v862 = vld [vmem:[#allocation3] sm:$0xff]
        %v863 = vld [vmem:[#allocation2] sm:$0xff]
        %865 = vrot.lane.b32.xlu0 %v862, 112
        %v866 = vpop.permute.xlu0 %865
        %868 = vrot.lane.b32.xlu0 %v863, 112
        %v869 = vpop.permute.xlu0 %868
        %v870 = vsel %vm519, %v866, 0
        %v872 = vsel %vm519, %v869, 0
        %874 = vmatprep.subr.mxu0 0.0
        %875 = vmatpush1.xpose.msra.mxu0 %v872
        %876 = vmatprep.subr.mxu0 0.0
        %877 = vmatpush1.xpose.msra.mxu0 0.0
        %878 = vmatprep.subr.mxu0 0.0
        %879 = vmatpush1.xpose.msra.mxu0 0.0
        %880 = vmatprep.subr.mxu0 0.0
        %881 = vmatpush1.xpose.msra.mxu0 0.0
        %882 = vmatprep.subr.mxu0 0.0
        %883 = vmatpush1.xpose.msra.mxu0 0.0
        %884 = vmatprep.subr.mxu0 0.0
        %885 = vmatpush1.xpose.msra.mxu0 0.0
        %886 = vmatprep.subr.mxu0 0.0
        %887 = vmatpush1.xpose.msra.mxu0 0.0
        %888 = vmatprep.subr.mxu0 0.0
        %889 = vmatpush1.xpose.msra.mxu0 0.0
        %890 = vmatprep.subr.mxu0 0.0
        %891 = vmatpush1.xpose.msra.mxu0 0.0
        %892 = vmatprep.subr.mxu0 0.0
        %893 = vmatpush1.xpose.msra.mxu0 0.0
        %894 = vmatprep.subr.mxu0 0.0
        %895 = vmatpush1.xpose.msra.mxu0 0.0
        %896 = vmatprep.subr.mxu0 0.0
        %897 = vmatpush1.xpose.msra.mxu0 0.0
        %898 = vmatprep.subr.mxu0 0.0
        %899 = vmatpush1.xpose.msra.mxu0 0.0
        %900 = vmatprep.subr.mxu0 0.0
        %901 = vmatpush1.xpose.msra.mxu0 0.0
        %902 = vmatprep.subr.mxu0 0.0
        %903 = vmatpush1.xpose.msra.mxu0 0.0
        %904 = vmatprep.subr.mxu0 0.0
        %905 = vmatpush1.xpose.msra.mxu0 0.0
        %906 = vmatprep.subr.mxu0 0.0
        %907 = vmatpush1.xpose.msra.mxu0 0.0
        %908 = vmatprep.subr.mxu0 0.0
        %909 = vmatpush1.xpose.msra.mxu0 0.0
        %910 = vmatprep.subr.mxu0 0.0
        %911 = vmatpush1.xpose.msra.mxu0 0.0
        %912 = vmatprep.subr.mxu0 0.0
        %913 = vmatpush1.xpose.msra.mxu0 0.0
        %914 = vmatprep.subr.mxu0 0.0
        %915 = vmatpush1.xpose.msra.mxu0 0.0
        %916 = vmatprep.subr.mxu0 0.0
        %917 = vmatpush1.xpose.msra.mxu0 0.0
        %918 = vmatprep.subr.mxu0 0.0
        %919 = vmatpush1.xpose.msra.mxu0 0.0
        %920 = vmatprep.subr.mxu0 0.0
        %921 = vmatpush1.xpose.msra.mxu0 0.0
        %922 = vmatprep.subr.mxu0 0.0
        %923 = vmatpush1.xpose.msra.mxu0 0.0
        %924 = vmatprep.subr.mxu0 0.0
        %925 = vmatpush1.xpose.msra.mxu0 0.0
        %926 = vmatprep.subr.mxu0 0.0
        %927 = vmatpush1.xpose.msra.mxu0 0.0
        %928 = vmatprep.subr.mxu0 0.0
        %929 = vmatpush1.xpose.msra.mxu0 0.0
        %930 = vmatprep.subr.mxu0 0.0
        %931 = vmatpush1.xpose.msra.mxu0 0.0
        %932 = vmatprep.subr.mxu0 0.0
        %933 = vmatpush1.xpose.msra.mxu0 0.0
        %934 = vmatprep.subr.mxu0 0.0
        %935 = vmatpush1.xpose.msra.mxu0 0.0
        %936 = vmatprep.subr.mxu0 0.0
        %937 = vmatpush1.xpose.msra.mxu0 0.0
        %938 = vmatprep.mubr.f32.mxu0 0.0
        %939 = vmatmul.mubr.f32.gmra.mrb[0].mxu0 %v870
        %v940 = vpop.f32.mrb[0].mxu0
        %v941 = vadd.f32 0.0, %v940
        %v942 = vpop.f32.mrb[0].mxu0
        %943 = vdwg.mxu0
        %v944 = vsel %vm519, %v941, -inf
        %945 = vmax.xlane.f32.xlu0 %v944
        %v946 = vpop.xlane.xlu0 %945
        %v947 = vsub.f32 %v941, %v946
        %v948 = vmul.f32 %v947, 1.442695
        %v949 = vpow.pop %v948
        %v950 = vsel %vm519, %v949, 0.0
        %951 = vadd.xlane.f32.xlu0 %v950
        %v952 = vpop.xlane.xlu0 %951
        %v953 = vrcp.pop %v952
        %v954 = vmul.f32 %v949, %v953
        %s955 = scalar_lea.vmem %s349, 16 [#allocation15]
        %956 = vst.msk [vmem:[%s955] sm:$0xff] %vm519, %v954
        %957 = vrot.lane.b32.xlu0 %v863, 80
        %v958 = vpop.permute.xlu0 %957
        %v961 = vsel %vm519, %v954, 0
        %963 = vmatprep.subr.mxu0 0.0
        %964 = vmatpush1.msra.mxu0 %v958
        %965 = vmatprep.subr.mxu0 0.0
        %966 = vmatpush1.msra.mxu0 0.0
        %967 = vmatprep.subr.mxu0 0.0
        %968 = vmatpush1.msra.mxu0 0.0
        %969 = vmatprep.subr.mxu0 0.0
        %970 = vmatpush1.msra.mxu0 0.0
        %971 = vmatprep.subr.mxu0 0.0
        %972 = vmatpush1.msra.mxu0 0.0
        %973 = vmatprep.subr.mxu0 0.0
        %974 = vmatpush1.msra.mxu0 0.0
        %975 = vmatprep.subr.mxu0 0.0
        %976 = vmatpush1.msra.mxu0 0.0
        %977 = vmatprep.subr.mxu0 0.0
        %978 = vmatpush1.msra.mxu0 0.0
        %979 = vmatprep.subr.mxu0 0.0
        %980 = vmatpush1.msra.mxu0 0.0
        %981 = vmatprep.subr.mxu0 0.0
        %982 = vmatpush1.msra.mxu0 0.0
        %983 = vmatprep.subr.mxu0 0.0
        %984 = vmatpush1.msra.mxu0 0.0
        %985 = vmatprep.subr.mxu0 0.0
        %986 = vmatpush1.msra.mxu0 0.0
        %987 = vmatprep.subr.mxu0 0.0
        %988 = vmatpush1.msra.mxu0 0.0
        %989 = vmatprep.subr.mxu0 0.0
        %990 = vmatpush1.msra.mxu0 0.0
        %991 = vmatprep.subr.mxu0 0.0
        %992 = vmatpush1.msra.mxu0 0.0
        %993 = vmatprep.subr.mxu0 0.0
        %994 = vmatpush1.msra.mxu0 0.0
        %995 = vmatprep.subr.mxu0 0.0
        %996 = vmatpush1.msra.mxu0 0.0
        %997 = vmatprep.subr.mxu0 0.0
        %998 = vmatpush1.msra.mxu0 0.0
        %999 = vmatprep.subr.mxu0 0.0
        %1000 = vmatpush1.msra.mxu0 0.0
        %1001 = vmatprep.subr.mxu0 0.0
        %1002 = vmatpush1.msra.mxu0 0.0
        %1003 = vmatprep.subr.mxu0 0.0
        %1004 = vmatpush1.msra.mxu0 0.0
        %1005 = vmatprep.subr.mxu0 0.0
        %1006 = vmatpush1.msra.mxu0 0.0
        %1007 = vmatprep.subr.mxu0 0.0
        %1008 = vmatpush1.msra.mxu0 0.0
        %1009 = vmatprep.subr.mxu0 0.0
        %1010 = vmatpush1.msra.mxu0 0.0
        %1011 = vmatprep.subr.mxu0 0.0
        %1012 = vmatpush1.msra.mxu0 0.0
        %1013 = vmatprep.subr.mxu0 0.0
        %1014 = vmatpush1.msra.mxu0 0.0
        %1015 = vmatprep.subr.mxu0 0.0
        %1016 = vmatpush1.msra.mxu0 0.0
        %1017 = vmatprep.subr.mxu0 0.0
        %1018 = vmatpush1.msra.mxu0 0.0
        %1019 = vmatprep.subr.mxu0 0.0
        %1020 = vmatpush1.msra.mxu0 0.0
        %1021 = vmatprep.subr.mxu0 0.0
        %1022 = vmatpush1.msra.mxu0 0.0
        %1023 = vmatprep.subr.mxu0 0.0
        %1024 = vmatpush1.msra.mxu0 0.0
        %1025 = vmatprep.subr.mxu0 0.0
        %1026 = vmatpush1.msra.mxu0 0.0
        %1027 = vmatprep.mubr.f32.mxu0 0.0
        %1028 = vmatmul.mubr.f32.gmra.mrb[0].mxu0 %v961
        %v1029 = vpop.f32.mrb[0].mxu0
        %v1030 = vadd.f32 0.0, %v1029
        %v1031 = vpop.f32.mrb[0].mxu0
        %1032 = vdwg.mxu0
        %1034 = vrot.lane.b32.xlu0 %v1030, 16
        %v1035 = vpop.permute.xlu0 %1034
        %vm1037 = vcmask 195712
        %1038 = vst.msk [vmem:[#allocation4] sm:$0xff] %vm1037, %v1035
        %v1039 = vld [vmem:[#allocation3] sm:$0xff]
        %v1040 = vld [vmem:[#allocation2] sm:$0xff]
        %1042 = vrot.lane.b32.xlu0 %v1039, 104
        %v1043 = vpop.permute.xlu0 %1042
        %1045 = vrot.lane.b32.xlu0 %v1040, 104
        %v1046 = vpop.permute.xlu0 %1045
        %v1047 = vsel %vm519, %v1043, 0
        %v1049 = vsel %vm519, %v1046, 0
        %1051 = vmatprep.subr.mxu0 0.0
        %1052 = vmatpush1.xpose.msra.mxu0 %v1049
        %1053 = vmatprep.subr.mxu0 0.0
        %1054 = vmatpush1.xpose.msra.mxu0 0.0
        %1055 = vmatprep.subr.mxu0 0.0
        %1056 = vmatpush1.xpose.msra.mxu0 0.0
        %1057 = vmatprep.subr.mxu0 0.0
        %1058 = vmatpush1.xpose.msra.mxu0 0.0
        %1059 = vmatprep.subr.mxu0 0.0
        %1060 = vmatpush1.xpose.msra.mxu0 0.0
        %1061 = vmatprep.subr.mxu0 0.0
        %1062 = vmatpush1.xpose.msra.mxu0 0.0
        %1063 = vmatprep.subr.mxu0 0.0
        %1064 = vmatpush1.xpose.msra.mxu0 0.0
        %1065 = vmatprep.subr.mxu0 0.0
        %1066 = vmatpush1.xpose.msra.mxu0 0.0
        %1067 = vmatprep.subr.mxu0 0.0
        %1068 = vmatpush1.xpose.msra.mxu0 0.0
        %1069 = vmatprep.subr.mxu0 0.0
        %1070 = vmatpush1.xpose.msra.mxu0 0.0
        %1071 = vmatprep.subr.mxu0 0.0
        %1072 = vmatpush1.xpose.msra.mxu0 0.0
        %1073 = vmatprep.subr.mxu0 0.0
        %1074 = vmatpush1.xpose.msra.mxu0 0.0
        %1075 = vmatprep.subr.mxu0 0.0
        %1076 = vmatpush1.xpose.msra.mxu0 0.0
        %1077 = vmatprep.subr.mxu0 0.0
        %1078 = vmatpush1.xpose.msra.mxu0 0.0
        %1079 = vmatprep.subr.mxu0 0.0
        %1080 = vmatpush1.xpose.msra.mxu0 0.0
        %1081 = vmatprep.subr.mxu0 0.0
        %1082 = vmatpush1.xpose.msra.mxu0 0.0
        %1083 = vmatprep.subr.mxu0 0.0
        %1084 = vmatpush1.xpose.msra.mxu0 0.0
        %1085 = vmatprep.subr.mxu0 0.0
        %1086 = vmatpush1.xpose.msra.mxu0 0.0
        %1087 = vmatprep.subr.mxu0 0.0
        %1088 = vmatpush1.xpose.msra.mxu0 0.0
        %1089 = vmatprep.subr.mxu0 0.0
        %1090 = vmatpush1.xpose.msra.mxu0 0.0
        %1091 = vmatprep.subr.mxu0 0.0
        %1092 = vmatpush1.xpose.msra.mxu0 0.0
        %1093 = vmatprep.subr.mxu0 0.0
        %1094 = vmatpush1.xpose.msra.mxu0 0.0
        %1095 = vmatprep.subr.mxu0 0.0
        %1096 = vmatpush1.xpose.msra.mxu0 0.0
        %1097 = vmatprep.subr.mxu0 0.0
        %1098 = vmatpush1.xpose.msra.mxu0 0.0
        %1099 = vmatprep.subr.mxu0 0.0
        %1100 = vmatpush1.xpose.msra.mxu0 0.0
        %1101 = vmatprep.subr.mxu0 0.0
        %1102 = vmatpush1.xpose.msra.mxu0 0.0
        %1103 = vmatprep.subr.mxu0 0.0
        %1104 = vmatpush1.xpose.msra.mxu0 0.0
        %1105 = vmatprep.subr.mxu0 0.0
        %1106 = vmatpush1.xpose.msra.mxu0 0.0
        %1107 = vmatprep.subr.mxu0 0.0
        %1108 = vmatpush1.xpose.msra.mxu0 0.0
        %1109 = vmatprep.subr.mxu0 0.0
        %1110 = vmatpush1.xpose.msra.mxu0 0.0
        %1111 = vmatprep.subr.mxu0 0.0
        %1112 = vmatpush1.xpose.msra.mxu0 0.0
        %1113 = vmatprep.subr.mxu0 0.0
        %1114 = vmatpush1.xpose.msra.mxu0 0.0
        %1115 = vmatprep.mubr.f32.mxu0 0.0
        %1116 = vmatmul.mubr.f32.gmra.mrb[0].mxu0 %v1047
        %v1117 = vpop.f32.mrb[0].mxu0
        %v1118 = vadd.f32 0.0, %v1117
        %v1119 = vpop.f32.mrb[0].mxu0
        %1120 = vdwg.mxu0
        %v1121 = vsel %vm519, %v1118, -inf
        %1122 = vmax.xlane.f32.xlu0 %v1121
        %v1123 = vpop.xlane.xlu0 %1122
        %v1124 = vsub.f32 %v1118, %v1123
        %v1125 = vmul.f32 %v1124, 1.442695
        %v1126 = vpow.pop %v1125
        %v1127 = vsel %vm519, %v1126, 0.0
        %1128 = vadd.xlane.f32.xlu0 %v1127
        %v1129 = vpop.xlane.xlu0 %1128
        %v1130 = vrcp.pop %v1129
        %v1131 = vmul.f32 %v1126, %v1130
        %s1132 = scalar_lea.vmem %s349, 24 [#allocation15]
        %1133 = vst.msk [vmem:[%s1132] sm:$0xff] %vm519, %v1131
        %1134 = vrot.lane.b32.xlu0 %v1040, 72
        %v1135 = vpop.permute.xlu0 %1134
        %v1138 = vsel %vm519, %v1131, 0
        %1140 = vmatprep.subr.mxu0 0.0
        %1141 = vmatpush1.msra.mxu0 %v1135
        %1142 = vmatprep.subr.mxu0 0.0
        %1143 = vmatpush1.msra.mxu0 0.0
        %1144 = vmatprep.subr.mxu0 0.0
        %1145 = vmatpush1.msra.mxu0 0.0
        %1146 = vmatprep.subr.mxu0 0.0
        %1147 = vmatpush1.msra.mxu0 0.0
        %1148 = vmatprep.subr.mxu0 0.0
        %1149 = vmatpush1.msra.mxu0 0.0
        %1150 = vmatprep.subr.mxu0 0.0
        %1151 = vmatpush1.msra.mxu0 0.0
        %1152 = vmatprep.subr.mxu0 0.0
        %1153 = vmatpush1.msra.mxu0 0.0
        %1154 = vmatprep.subr.mxu0 0.0
        %1155 = vmatpush1.msra.mxu0 0.0
        %1156 = vmatprep.subr.mxu0 0.0
        %1157 = vmatpush1.msra.mxu0 0.0
        %1158 = vmatprep.subr.mxu0 0.0
        %1159 = vmatpush1.msra.mxu0 0.0
        %1160 = vmatprep.subr.mxu0 0.0
        %1161 = vmatpush1.msra.mxu0 0.0
        %1162 = vmatprep.subr.mxu0 0.0
        %1163 = vmatpush1.msra.mxu0 0.0
        %1164 = vmatprep.subr.mxu0 0.0
        %1165 = vmatpush1.msra.mxu0 0.0
        %1166 = vmatprep.subr.mxu0 0.0
        %1167 = vmatpush1.msra.mxu0 0.0
        %1168 = vmatprep.subr.mxu0 0.0
        %1169 = vmatpush1.msra.mxu0 0.0
        %1170 = vmatprep.subr.mxu0 0.0
        %1171 = vmatpush1.msra.mxu0 0.0
        %1172 = vmatprep.subr.mxu0 0.0
        %1173 = vmatpush1.msra.mxu0 0.0
        %1174 = vmatprep.subr.mxu0 0.0
        %1175 = vmatpush1.msra.mxu0 0.0
        %1176 = vmatprep.subr.mxu0 0.0
        %1177 = vmatpush1.msra.mxu0 0.0
        %1178 = vmatprep.subr.mxu0 0.0
        %1179 = vmatpush1.msra.mxu0 0.0
        %1180 = vmatprep.subr.mxu0 0.0
        %1181 = vmatpush1.msra.mxu0 0.0
        %1182 = vmatprep.subr.mxu0 0.0
        %1183 = vmatpush1.msra.mxu0 0.0
        %1184 = vmatprep.subr.mxu0 0.0
        %1185 = vmatpush1.msra.mxu0 0.0
        %1186 = vmatprep.subr.mxu0 0.0
        %1187 = vmatpush1.msra.mxu0 0.0
        %1188 = vmatprep.subr.mxu0 0.0
        %1189 = vmatpush1.msra.mxu0 0.0
        %1190 = vmatprep.subr.mxu0 0.0
        %1191 = vmatpush1.msra.mxu0 0.0
        %1192 = vmatprep.subr.mxu0 0.0
        %1193 = vmatpush1.msra.mxu0 0.0
        %1194 = vmatprep.subr.mxu0 0.0
        %1195 = vmatpush1.msra.mxu0 0.0
        %1196 = vmatprep.subr.mxu0 0.0
        %1197 = vmatpush1.msra.mxu0 0.0
        %1198 = vmatprep.subr.mxu0 0.0
        %1199 = vmatpush1.msra.mxu0 0.0
        %1200 = vmatprep.subr.mxu0 0.0
        %1201 = vmatpush1.msra.mxu0 0.0
        %1202 = vmatprep.subr.mxu0 0.0
        %1203 = vmatpush1.msra.mxu0 0.0
        %1204 = vmatprep.mubr.f32.mxu0 0.0
        %1205 = vmatmul.mubr.f32.gmra.mrb[0].mxu0 %v1138
        %v1206 = vpop.f32.mrb[0].mxu0
        %v1207 = vadd.f32 0.0, %v1206
        %v1208 = vpop.f32.mrb[0].mxu0
        %1209 = vdwg.mxu0
        %1211 = vrot.lane.b32.xlu0 %v1207, 24
        %v1212 = vpop.permute.xlu0 %1211
        %vm1214 = vcmask 261312
        %1215 = vst.msk [vmem:[#allocation4] sm:$0xff] %vm1214, %v1212
        %v1216 = vld [vmem:[#allocation4] sm:$0xff]
        %v1217 = vld [vmem:[#allocation11] sm:$0xff]
        %v1218 = vld [vmem:[#allocation11 + $0x8] sm:$0xff]
        %v1219 = vld [vmem:[#allocation11 + $0x10] sm:$0xff]
        %v1220 = vld [vmem:[#allocation11 + $0x18] sm:$0xff]
        %v1221 = vld [vmem:[#allocation13] sm:$0x1]
        %v1223 = vlaneseq
        %v1224 = vshrl.u32 %v1223, 7
        %v1225 = vsub.s32 0, %v1224
        %v1226 = vrot.slane %v1221, %v1225
        %v1229 = vsel %vm442, %v1216, 0
        %1231 = vmatprep.subr.mxu0 0.0
        %1232 = vmatpush1.msra.mxu0 %v1217
        %1233 = vmatprep.subr.mxu0 0.0
        %1234 = vmatpush1.msra.mxu0 %v1218
        %1235 = vmatprep.subr.mxu0 0.0
        %1236 = vmatpush1.msra.mxu0 %v1219
        %1237 = vmatprep.subr.mxu0 0.0
        %1238 = vmatpush1.msra.mxu0 %v1220
        %1239 = vmatprep.subr.mxu0 0.0
        %1240 = vmatpush1.msra.mxu0 0.0
        %1241 = vmatprep.subr.mxu0 0.0
        %1242 = vmatpush1.msra.mxu0 0.0
        %1243 = vmatprep.subr.mxu0 0.0
        %1244 = vmatpush1.msra.mxu0 0.0
        %1245 = vmatprep.subr.mxu0 0.0
        %1246 = vmatpush1.msra.mxu0 0.0
        %1247 = vmatprep.subr.mxu0 0.0
        %1248 = vmatpush1.msra.mxu0 0.0
        %1249 = vmatprep.subr.mxu0 0.0
        %1250 = vmatpush1.msra.mxu0 0.0
        %1251 = vmatprep.subr.mxu0 0.0
        %1252 = vmatpush1.msra.mxu0 0.0
        %1253 = vmatprep.subr.mxu0 0.0
        %1254 = vmatpush1.msra.mxu0 0.0
        %1255 = vmatprep.subr.mxu0 0.0
        %1256 = vmatpush1.msra.mxu0 0.0
        %1257 = vmatprep.subr.mxu0 0.0
        %1258 = vmatpush1.msra.mxu0 0.0
        %1259 = vmatprep.subr.mxu0 0.0
        %1260 = vmatpush1.msra.mxu0 0.0
        %1261 = vmatprep.subr.mxu0 0.0
        %1262 = vmatpush1.msra.mxu0 0.0
        %1263 = vmatprep.subr.mxu0 0.0
        %1264 = vmatpush1.msra.mxu0 0.0
        %1265 = vmatprep.subr.mxu0 0.0
        %1266 = vmatpush1.msra.mxu0 0.0
        %1267 = vmatprep.subr.mxu0 0.0
        %1268 = vmatpush1.msra.mxu0 0.0
        %1269 = vmatprep.subr.mxu0 0.0
        %1270 = vmatpush1.msra.mxu0 0.0
        %1271 = vmatprep.subr.mxu0 0.0
        %1272 = vmatpush1.msra.mxu0 0.0
        %1273 = vmatprep.subr.mxu0 0.0
        %1274 = vmatpush1.msra.mxu0 0.0
        %1275 = vmatprep.subr.mxu0 0.0
        %1276 = vmatpush1.msra.mxu0 0.0
        %1277 = vmatprep.subr.mxu0 0.0
        %1278 = vmatpush1.msra.mxu0 0.0
        %1279 = vmatprep.subr.mxu0 0.0
        %1280 = vmatpush1.msra.mxu0 0.0
        %1281 = vmatprep.subr.mxu0 0.0
        %1282 = vmatpush1.msra.mxu0 0.0
        %1283 = vmatprep.subr.mxu0 0.0
        %1284 = vmatpush1.msra.mxu0 0.0
        %1285 = vmatprep.subr.mxu0 0.0
        %1286 = vmatpush1.msra.mxu0 0.0
        %1287 = vmatprep.subr.mxu0 0.0
        %1288 = vmatpush1.msra.mxu0 0.0
        %1289 = vmatprep.subr.mxu0 0.0
        %1290 = vmatpush1.msra.mxu0 0.0
        %1291 = vmatprep.subr.mxu0 0.0
        %1292 = vmatpush1.msra.mxu0 0.0
        %1293 = vmatprep.subr.mxu0 0.0
        %1294 = vmatpush1.msra.mxu0 0.0
        %1295 = vmatprep.mubr.f32.mxu0 0.0
        %1296 = vmatmul.mubr.f32.gmra.mrb[0].mxu0 %v1229
        %v1297 = vpop.f32.mrb[0].mxu0
        %v1298 = vadd.f32 %v1226, %v1297
        %v1299 = vpop.f32.mrb[0].mxu0
        %1300 = vdwg.mxu0
        %1301 = vst.msk [vmem:[%s342] sm:$0xff] %vm442, %v1298
        %s1302 = sand.u32 %s161, 1
        %s1303 = scalar_lea.sflag [#allocation7], %s1302
        %s1304 = sand.u32 %s161, 1
        %s1305 = smul.addr %s1304, 8
        %s1306 = scalar_lea.vmem [#allocation14], %s1305
        %s1307 = sand.u32 %s189, 1
        %s1308 = scalar_lea.sflag [#allocation16], %s1307
        %s1309 = sand.u32 %s189, 1
        %s1310 = smul.addr %s1309, 32
        %s1311 = scalar_lea.vmem [#allocation15], %s1310
        // Predicated region
        $region65: #{tpu_custom_call.1} parent=39 // pred_check
          %p1312 = pneg %p171
        $region66: #{tpu_custom_call.1} parent=39 // pred_check_branch
          %1314 = sbr.rel (%p1312) target = $region68
        $region67: #{tpu_custom_call.1} parent=39 // pred_region
          %s1316 = ssub.s32 128, 128
          %1317 = vsyncadd %s1303, %s1316
          %s1318 = sadd.s32 %s34, %s33
          %s1319 = smul.addr %s1318, 128
          %s1320 = scalar_lea.hbm %s5, %s1319
          %s1322 = sshll.u32 %s1306, 4
          %s1323 = int_to_ptr.vmem [resolvable:$true] %s1322
          %1325 = dma.vmem_to_hbm [thread:$0]  %s1323, 128, %s1320, %s1303
        $region68: #{tpu_custom_call.1} parent=39 // pred_fallthru
          _
        // Predicated region
        $region69: #{tpu_custom_call.1} parent=39 // pred_check
          %p1326 = pneg %p199
        $region70: #{tpu_custom_call.1} parent=39 // pred_check_branch
          %1328 = sbr.rel (%p1326) target = $region72
        $region71: #{tpu_custom_call.1} parent=39 // pred_region
          %s1330 = ssub.s32 512, 512
          %1331 = vsyncadd %s1308, %s1330
          %s1332 = smul.addr %s33, 4
          %s1333 = sadd.s32 %s34, %s1332
          %s1334 = smul.addr %s1333, 128
          %s1335 = scalar_lea.hbm %s6, %s1334
          %s1336 = sshll.u32 %s1311, 4
          %s1337 = int_to_ptr.vmem [resolvable:$true] %s1336
          %1342 = dma.vmem_to_hbm [thread:$0]  %s1337, 512, %s1335, %s1308, 128, 128, 8
        $region72: #{tpu_custom_call.1} parent=39 // pred_fallthru
          _
      $region40: #{tpu_custom_call.1} parent=5 // pred_fallthru
        _
      %p1343 = scmp.le.s32.totalorder 2, %s24
      // Predicated region
      $region73: #{tpu_custom_call.1} parent=5 // pred_check
        %p1344 = pneg %p1343
      $region74: #{tpu_custom_call.1} parent=5 // pred_check_branch
        %1346 = sbr.rel (%p1344) target = $region76
      $region75: #{tpu_custom_call.1} parent=5 // pred_region
        %s1347 = ssub.s32 %s24, 2
        // Predicated region
        $region77: #{tpu_custom_call.1} parent=75 // pred_check
          %p1348 = pneg %p177
        $region78: #{tpu_custom_call.1} parent=75 // pred_check_branch
          %1350 = sbr.rel (%p1348) target = $region80
        $region79: #{tpu_custom_call.1} parent=75 // pred_region
          %s1351 = sand.u32 %s162, 1
          %s1352 = scalar_lea.sflag [#allocation7], %s1351
          %s1353 = sand.u32 %s162, 1
          %s1354 = smul.addr %s1353, 8
          %s1355 = scalar_lea.vmem [#allocation14], %s1354
          %1356 = dma.done %s1352, 128
        $region80: #{tpu_custom_call.1} parent=75 // pred_fallthru
          _
        // Predicated region
        $region81: #{tpu_custom_call.1} parent=75 // pred_check
          %p1357 = pneg %p205
        $region82: #{tpu_custom_call.1} parent=75 // pred_check_branch
          %1359 = sbr.rel (%p1357) target = $region84
        $region83: #{tpu_custom_call.1} parent=75 // pred_region
          %s1360 = sand.u32 %s190, 1
          %s1361 = scalar_lea.sflag [#allocation16], %s1360
          %s1362 = sand.u32 %s190, 1
          %s1363 = smul.addr %s1362, 32
          %s1364 = scalar_lea.vmem [#allocation15], %s1363
          %1365 = dma.done %s1361, 512
        $region84: #{tpu_custom_call.1} parent=75 // pred_fallthru
          _
      $region76: #{tpu_custom_call.1} parent=5 // pred_fallthru
        _
    $region6: #{tpu_custom_call.1} parent=1 // loop_footer
      %s28 = sadd.s32 1, %s24
    $region7: #{tpu_custom_call.1} parent=1 // loop_footer_branch
      %23 = sbr.rel target = $region3
    $region8: #{tpu_custom_call.1} parent=1 // loop_exit
      _
    %1366 = vsyncpa [#allocation6], 1
    %s1367 = scalar_lea.sflag [#allocation6], 1
    %1368 = vsyncpa %s1367, 1
    %1369 = vsyncpa [#allocation9], 1
    %1370 = vsyncpa [#allocation12], 1
    %1371 = vsyncpa [#allocation7], 1
    %s1372 = scalar_lea.sflag [#allocation7], 1
    %1373 = vsyncpa %s1372, 1
    %1374 = vsyncpa [#allocation16], 1
    %s1375 = scalar_lea.sflag [#allocation16], 1
    %1376 = vsyncpa %s1375, 1

</llo_original>
